<compile_context>
chip_gen: v5e
topology: v5e:2x2
jax: 0.10.0
libtpu: 0.0.40
codegen_flags: <defaults>
</compile_context>

<pallas_src>
import functools

import jax
import jax.numpy as jnp
from jax import lax
from jax.experimental import pallas as pl
from jax.experimental.pallas import tpu as pltpu


# ----------------------------------------------------------------------------
# Fast path: stride == 1 and "same" output (OH == H, OW == W, i.e. 2*pad==K-1)
# ----------------------------------------------------------------------------

def _conv_same_kernel(x_ref, w_ref, b_ref, m_ref, o_ref, *,
                      KH, KW, H, W, padding, relu, use_bf16, roll_sign):
    """One grid step: Nb images, full conv, fused bias + ReLU.

    x_ref: (Nb, Cin, H*W)      lane-dense flattened NCHW activations
    w_ref: (KH*KW, Cout, Cin)  per-tap weight slices, row t = kh*KW + kw
    b_ref: (Cout, 1)
    m_ref: (KH*KW, H*W)        precomputed 0/1 boundary masks per tap
    o_ref: (Nb, Cout, H*W)     lane-dense flattened NCHW output
    """
    nb_block = x_ref.shape[0]
    HW = H * W
    cout = o_ref.shape[1]

    w_all = w_ref[...]                        # tiny, resident across the grid
    m_all = m_ref[...]
    bias = b_ref[...].astype(jnp.float32)     # (Cout, 1)

    for nb in range(nb_block):                # static unroll, Nb is small
        xb = x_ref[nb]                        # (Cin, H*W)
        if use_bf16:
            xb = xb.astype(jnp.bfloat16)
        acc = jnp.zeros((cout, HW), jnp.float32)
        for kh in range(KH):
            for kw in range(KW):
                t = kh * KW + kw
                # Output (oh, ow) reads input (oh + kh - p, ow + kw - p):
                # a constant offset d along the flattened spatial axis.
                d = (kh - padding) * W + (kw - padding)
                shift = (-roll_sign * d) % HW
                tap = pltpu.roll(xb, shift, axis=1) if shift else xb
                if kh != padding or kw != padding:
                    # Zero out positions whose source pixel is outside the
                    # image -- this *is* the zero padding (one VPU multiply).
                    tap = tap * m_all[t:t + 1, :].astype(tap.dtype)
                acc = acc + jnp.dot(w_all[t], tap,
                                    preferred_element_type=jnp.float32)
        y = acc + bias
        if relu:
            y = jnp.maximum(y, 0.0)
        o_ref[nb] = y.astype(o_ref.dtype)


# ----------------------------------------------------------------------------
# General path: any stride / padding (input is pre-padded in the wrapper)
# ----------------------------------------------------------------------------

def _conv_general_kernel(x_ref, w_ref, b_ref, o_ref, *,
                         KH, KW, OH, OW, stride, relu, use_bf16):
    """x_ref: (1, Cin, Hp, Wp); w_ref: (KH*KW, Cout, Cin); b_ref: (Cout, 1);
    o_ref: (1, Cout, OH*OW)."""
    cin = x_ref.shape[1]
    cout = o_ref.shape[1]
    xp = x_ref[0]                             # (Cin, Hp, Wp), already padded
    if use_bf16:
        xp = xp.astype(jnp.bfloat16)
    w_all = w_ref[...]

    acc = jnp.zeros((cout, OH * OW), jnp.float32)
    for kh in range(KH):
        for kw in range(KW):
            t = kh * KW + kw
            if stride == 1:
                tap = xp[:, kh:kh + OH, kw:kw + OW]
            else:
                # Note: strided slicing along the lane axis lowers to
                # relayouts; acceptable for this (cold) fallback path.
                tap = xp[:, kh:kh + stride * (OH - 1) + 1:stride,
                         kw:kw + stride * (OW - 1) + 1:stride]
            acc = acc + jnp.dot(w_all[t], tap.reshape(cin, OH * OW),
                                preferred_element_type=jnp.float32)
    acc = acc + b_ref[...].astype(jnp.float32)
    if relu:
        acc = jnp.maximum(acc, 0.0)
    o_ref[0] = acc.astype(o_ref.dtype)


# ----------------------------------------------------------------------------
# Helpers
# ----------------------------------------------------------------------------

@functools.lru_cache(maxsize=None)
def _roll_convention(rows, cols, dtype):
    """Detect pltpu.roll's shift convention with a tiny probe kernel.

    Returns +1 if pltpu.roll matches jnp.roll, -1 if the sign is reversed,
    and 0 if neither (-> use the roll-free general kernel).
    """
    if cols < 3:
        return 0
    s = 19 % cols
    if s == 0 or (2 * s) % cols == 0:
        s = 1

    def probe(x_ref, o_ref):
        o_ref[...] = pltpu.roll(x_ref[...], s, axis=1)

    x = jnp.tile(jnp.arange(cols, dtype=jnp.float32)[None, :],
                 (rows, 1)).astype(dtype)
    try:
        got = pl.pallas_call(
            probe, out_shape=jax.ShapeDtypeStruct((rows, cols), x.dtype))(x)
    except Exception:
        return 0
    if bool(jnp.array_equal(got, jnp.roll(x, s, axis=1))):
        return 1
    if bool(jnp.array_equal(got, jnp.roll(x, -s, axis=1))):
        return -1
    return 0


def _build_tap_masks(KH, KW, H, W, padding, dtype):
    """masks[t, oh*W + ow] = 1 iff input pixel (oh+kh-p, ow+kw-p) is in-bounds.

    Constant-folded by XLA in the wrapper; DMA'd to VMEM once (constant
    index_map), so the kernel does zero per-step mask construction work.
    """
    oh = jnp.arange(H, dtype=jnp.int32)[:, None]
    ow = jnp.arange(W, dtype=jnp.int32)[None, :]
    rows = []
    for kh in range(KH):
        for kw in range(KW):
            ih = oh + (kh - padding)
            iw = ow + (kw - padding)
            valid = (ih >= 0) & (ih < H) & (iw >= 0) & (iw < W)
            rows.append(valid.reshape(H * W))
    return jnp.stack(rows, axis=0).astype(dtype)          # (KH*KW, H*W)


def _pick_batch_block(n):
    """Largest divisor of n that keeps the parallel grid length >= 2
    (so both v7x TensorCores get work); 1 otherwise."""
    best = 1
    for d in range(1, n + 1):
        if n % d == 0 and n // d >= 2:
            best = d
    return best


# ----------------------------------------------------------------------------
# Public wrapper
# ----------------------------------------------------------------------------

def layer_conv(x, w, b, *, stride=1, padding=0, relu=True, use_bf16=False,
               batch_block=None):
    """LayerConv forward: Conv2d(x; w, b, stride, padding) (+ ReLU).

    x: (N, Cin, H, W) NCHW; w: (Cout, Cin, KH, KW); b: (Cout,).  Returns NCHW.
    """
    N, Cin, H, W = x.shape
    Cout, Cin2, KH, KW = w.shape
    assert Cin == Cin2, (Cin, Cin2)
    OH = (H + 2 * padding - KH) // stride + 1
    OW = (W + 2 * padding - KW) // stride + 1
    assert OH > 0 and OW > 0, (OH, OW)

    compute_dtype = jnp.bfloat16 if use_bf16 else x.dtype

    # One-time tiny weight repack to per-tap (Cout, Cin) slices, t = kh*KW+kw.
    w_taps = jnp.transpose(w, (2, 3, 0, 1)).reshape(KH * KW, Cout, Cin)
    if use_bf16:
        w_taps = w_taps.astype(jnp.bfloat16)
    b2 = b.reshape(Cout, 1)

    fast = (stride == 1) and (OH == H) and (OW == W)
    roll_sign = _roll_convention(Cin, H * W, compute_dtype) if fast else 0

    if fast and roll_sign != 0:
        # ---- Fast path: roll + mask taps on a lane-dense (Cin, H*W) layout.
        Nb = batch_block if batch_block is not None else _pick_batch_block(N)
        assert N % Nb == 0, (N, Nb)
        x_flat = x.reshape(N, Cin, H * W)                 # metadata-only
        masks = _build_tap_masks(KH, KW, H, W, padding, compute_dtype)

        kernel = functools.partial(
            _conv_same_kernel, KH=KH, KW=KW, H=H, W=W, padding=padding,
            relu=relu, use_bf16=use_bf16, roll_sign=roll_sign)

        out = pl.pallas_call(
            kernel,
            out_shape=jax.ShapeDtypeStruct((N, Cout, H * W), x.dtype),
            grid_spec=pltpu.PrefetchScalarGridSpec(
                num_scalar_prefetch=0,
                grid=(N // Nb,),
                in_specs=[
                    pl.BlockSpec((Nb, Cin, H * W), lambda n: (n, 0, 0)),
                    pl.BlockSpec((KH * KW, Cout, Cin), lambda n: (0, 0, 0)),
                    pl.BlockSpec((Cout, 1), lambda n: (0, 0)),
                    pl.BlockSpec((KH * KW, H * W), lambda n: (0, 0)),
                ],
                out_specs=pl.BlockSpec((Nb, Cout, H * W), lambda n: (n, 0, 0)),
            ),
            compiler_params=pltpu.CompilerParams(
                dimension_semantics=("parallel",)),
        )(x_flat, w_taps, b2, masks)
    else:
        # ---- General path: one wrapper-side zero pad + in-kernel tap slices.
        if padding > 0:
            xp = jnp.pad(x, ((0, 0), (0, 0), (padding, padding),
                             (padding, padding)))
        else:
            xp = x
        Hp, Wp = H + 2 * padding, W + 2 * padding

        kernel = functools.partial(
            _conv_general_kernel, KH=KH, KW=KW, OH=OH, OW=OW, stride=stride,
            relu=relu, use_bf16=use_bf16)

        out = pl.pallas_call(
            kernel,
            out_shape=jax.ShapeDtypeStruct((N, Cout, OH * OW), x.dtype),
            grid_spec=pltpu.PrefetchScalarGridSpec(
                num_scalar_prefetch=0,
                grid=(N,),
                in_specs=[
                    pl.BlockSpec((1, Cin, Hp, Wp), lambda n: (n, 0, 0, 0)),
                    pl.BlockSpec((KH * KW, Cout, Cin), lambda n: (0, 0, 0)),
                    pl.BlockSpec((Cout, 1), lambda n: (0, 0)),
                ],
                out_specs=pl.BlockSpec((1, Cout, OH * OW), lambda n: (n, 0, 0)),
            ),
            compiler_params=pltpu.CompilerParams(
                dimension_semantics=("parallel",)),
        )(xp, w_taps, b2)

    # Metadata-only split of the flattened spatial dim -> NCHW.
    return out.reshape(N, Cout, OH, OW)


def _reference(x, w, b, *, stride, padding, relu):
    out = lax.conv_general_dilated(
        x, w, window_strides=(stride, stride),
        padding=[(padding, padding), (padding, padding)],
        dimension_numbers=("NCHW", "OIHW", "NCHW"))
    out = out + b[None, :, None, None]
    if relu:
        out = jnp.maximum(out, 0.0)
    return out


if __name__ == "__main__":
    # LayerConv(in_planes=4, out_planes=8, kernel_size=3, stride=1,
    #           padding=1, relu=True)
    N, Cin, H, W = 2, 4, 16, 16
    Cout, K, stride, padding, relu = 8, 3, 1, 1, True

    key = jax.random.PRNGKey(0)
    kx, kw, kb = jax.random.split(key, 3)
    x = jax.random.normal(kx, (N, Cin, H, W), jnp.float32)
    # Deterministic synthetic parameters (shapes match nn.Conv2d weight/bias).
    w = jax.random.normal(kw, (Cout, Cin, K, K), jnp.float32) * 0.1
    b = jax.random.normal(kb, (Cout,), jnp.float32) * 0.1

    out = layer_conv(x, w, b, stride=stride, padding=padding, relu=relu)
    out = jax.block_until_ready(out)
    ref = _reference(x, w, b, stride=stride, padding=padding, relu=relu)
    assert out.shape == ref.shape, (out.shape, ref.shape)
    assert jnp.allclose(out, ref, rtol=1e-5, atol=2e-5), \
        float(jnp.max(jnp.abs(out - ref)))

    # Also exercise batch folding (Nb=2 images per grid step, grid stays 2).
    x4 = jax.random.normal(kx, (4, Cin, H, W), jnp.float32)
    out4 = jax.block_until_ready(
        layer_conv(x4, w, b, stride=stride, padding=padding, relu=relu))
    ref4 = _reference(x4, w, b, stride=stride, padding=padding, relu=relu)
    assert jnp.allclose(out4, ref4, rtol=1e-5, atol=2e-5), \
        float(jnp.max(jnp.abs(out4 - ref4)))

    print("KERNEL_OK")
</pallas_src>

<mosaic_0001>
module attributes {stable_mosaic.version = 11 : i64} {
  func.func @probe(%arg0: memref<4x256xf32, #tpu.memory_space<vmem>>, %arg1: memref<4x256xf32, #tpu.memory_space<vmem>>) attributes {dimension_semantics = [], scalar_prefetch = 0 : i64, scratch_operands = 0 : i64, tpu.core_type = #tpu.core_type<tc>} {
    %c0 = arith.constant 0 : index
    %c0_0 = arith.constant 0 : index
    %0 = vector.load %arg0[%c0, %c0_0] : memref<4x256xf32, #tpu.memory_space<vmem>>, vector<4x256xf32>
    %c19_i32 = arith.constant 19 : i32
    %1 = tpu.dynamic_rotate %0 by %c19_i32 dim 1 : vector<4x256xf32>, i32 -> vector<4x256xf32>
    %c0_1 = arith.constant 0 : index
    %c0_2 = arith.constant 0 : index
    %2 = vector.load %arg1[%c0_1, %c0_2] : memref<4x256xf32, #tpu.memory_space<vmem>>, vector<4x256xf32>
    tpu.vector_store %arg1[%c0_1, %c0_2], %1 {strides = array<i32>} : memref<4x256xf32, #tpu.memory_space<vmem>>, vector<4x256xf32>,
    return
  }
}

module attributes {stable_mosaic.version = 11 : i64} {
  func.func @_conv_general_kernel(%arg0: i32, %arg1: memref<1x4x18x18xf32, #tpu.memory_space<vmem>>, %arg2: memref<9x8x4xf32, #tpu.memory_space<vmem>>, %arg3: memref<8x1xf32, #tpu.memory_space<vmem>>, %arg4: memref<1x8x256xf32, #tpu.memory_space<vmem>>) attributes {dimension_semantics = [#tpu.dimension_semantics<parallel>], iteration_bounds = array<i64: 2>, scalar_prefetch = 0 : i64, scratch_operands = 0 : i64, tpu.core_type = #tpu.core_type<tc>, window_params = [{transform_indices = @transform_0, window_bounds = array<i64: 1, 4, 18, 18>}, {pipeline_mode = #tpu.pipeline_mode<synchronous>, transform_indices = @transform_1, window_bounds = array<i64: 9, 8, 4>}, {pipeline_mode = #tpu.pipeline_mode<synchronous>, transform_indices = @transform_2, window_bounds = array<i64: 8, 1>}, {transform_indices = @transform_3, window_bounds = array<i64: 1, 8, 256>}]} {
    %c0 = arith.constant 0 : index
    %c0_0 = arith.constant 0 : index
    %c0_1 = arith.constant 0 : index
    %c0_2 = arith.constant 0 : index
    %0 = vector.load %arg1[%c0, %c0_0, %c0_1, %c0_2] : memref<1x4x18x18xf32, #tpu.memory_space<vmem>>, vector<1x4x18x18xf32>
    %1 = vector.shape_cast %0 : vector<1x4x18x18xf32> to vector<4x18x18xf32>
    %c0_3 = arith.constant 0 : index
    %c0_4 = arith.constant 0 : index
    %c0_5 = arith.constant 0 : index
    %2 = vector.load %arg2[%c0_3, %c0_4, %c0_5] : memref<9x8x4xf32, #tpu.memory_space<vmem>>, vector<9x8x4xf32>
    %cst = arith.constant 0.000000e+00 : f32
    %3 = vector.broadcast %cst : f32 to vector<8x256xf32>
    %4 = vector.extract_strided_slice %1 {offsets = [0, 0, 0], sizes = [4, 16, 16], strides = [1, 1, 1]} : vector<4x18x18xf32> to vector<4x16x16xf32>
    %5 = vector.extract_strided_slice %2 {offsets = [0, 0, 0], sizes = [1, 8, 4], strides = [1, 1, 1]} : vector<9x8x4xf32> to vector<1x8x4xf32>
    %6 = vector.shape_cast %5 : vector<1x8x4xf32> to vector<8x4xf32>
    %7 = vector.shape_cast %4 : vector<4x16x16xf32> to vector<4x256xf32>
    %cst_6 = arith.constant dense<0.000000e+00> : vector<8x256xf32>
    %8 = tpu.matmul %6, %7, %cst_6 {dimension_numbers = #tpu.dot_dimension_numbers<[1], [0], [0], [1], [0, 0, 1, 1], [], []>} : vector<8x4xf32>, vector<4x256xf32>, vector<8x256xf32> -> vector<8x256xf32>
    %9 = arith.addf %3, %8 : vector<8x256xf32>
    %10 = vector.extract_strided_slice %1 {offsets = [0, 0, 1], sizes = [4, 16, 16], strides = [1, 1, 1]} : vector<4x18x18xf32> to vector<4x16x16xf32>
    %11 = vector.extract_strided_slice %2 {offsets = [1, 0, 0], sizes = [1, 8, 4], strides = [1, 1, 1]} : vector<9x8x4xf32> to vector<1x8x4xf32>
    %12 = vector.shape_cast %11 : vector<1x8x4xf32> to vector<8x4xf32>
    %13 = vector.shape_cast %10 : vector<4x16x16xf32> to vector<4x256xf32>
    %cst_7 = arith.constant dense<0.000000e+00> : vector<8x256xf32>
    %14 = tpu.matmul %12, %13, %cst_7 {dimension_numbers = #tpu.dot_dimension_numbers<[1], [0], [0], [1], [0, 0, 1, 1], [], []>} : vector<8x4xf32>, vector<4x256xf32>, vector<8x256xf32> -> vector<8x256xf32>
    %15 = arith.addf %9, %14 : vector<8x256xf32>
    %16 = vector.extract_strided_slice %1 {offsets = [0, 0, 2], sizes = [4, 16, 16], strides = [1, 1, 1]} : vector<4x18x18xf32> to vector<4x16x16xf32>
    %17 = vector.extract_strided_slice %2 {offsets = [2, 0, 0], sizes = [1, 8, 4], strides = [1, 1, 1]} : vector<9x8x4xf32> to vector<1x8x4xf32>
    %18 = vector.shape_cast %17 : vector<1x8x4xf32> to vector<8x4xf32>
    %19 = vector.shape_cast %16 : vector<4x16x16xf32> to vector<4x256xf32>
    %cst_8 = arith.constant dense<0.000000e+00> : vector<8x256xf32>
    %20 = tpu.matmul %18, %19, %cst_8 {dimension_numbers = #tpu.dot_dimension_numbers<[1], [0], [0], [1], [0, 0, 1, 1], [], []>} : vector<8x4xf32>, vector<4x256xf32>, vector<8x256xf32> -> vector<8x256xf32>
    %21 = arith.addf %15, %20 : vector<8x256xf32>
    %22 = vector.extract_strided_slice %1 {offsets = [0, 1, 0], sizes = [4, 16, 16], strides = [1, 1, 1]} : vector<4x18x18xf32> to vector<4x16x16xf32>
    %23 = vector.extract_strided_slice %2 {offsets = [3, 0, 0], sizes = [1, 8, 4], strides = [1, 1, 1]} : vector<9x8x4xf32> to vector<1x8x4xf32>
    %24 = vector.shape_cast %23 : vector<1x8x4xf32> to vector<8x4xf32>
    %25 = vector.shape_cast %22 : vector<4x16x16xf32> to vector<4x256xf32>
    %cst_9 = arith.constant dense<0.000000e+00> : vector<8x256xf32>
    %26 = tpu.matmul %24, %25, %cst_9 {dimension_numbers = #tpu.dot_dimension_numbers<[1], [0], [0], [1], [0, 0, 1, 1], [], []>} : vector<8x4xf32>, vector<4x256xf32>, vector<8x256xf32> -> vector<8x256xf32>
    %27 = arith.addf %21, %26 : vector<8x256xf32>
    %28 = vector.extract_strided_slice %1 {offsets = [0, 1, 1], sizes = [4, 16, 16], strides = [1, 1, 1]} : vector<4x18x18xf32> to vector<4x16x16xf32>
    %29 = vector.extract_strided_slice %2 {offsets = [4, 0, 0], sizes = [1, 8, 4], strides = [1, 1, 1]} : vector<9x8x4xf32> to vector<1x8x4xf32>
    %30 = vector.shape_cast %29 : vector<1x8x4xf32> to vector<8x4xf32>
    %31 = vector.shape_cast %28 : vector<4x16x16xf32> to vector<4x256xf32>
    %cst_10 = arith.constant dense<0.000000e+00> : vector<8x256xf32>
    %32 = tpu.matmul %30, %31, %cst_10 {dimension_numbers = #tpu.dot_dimension_numbers<[1], [0], [0], [1], [0, 0, 1, 1], [], []>} : vector<8x4xf32>, vector<4x256xf32>, vector<8x256xf32> -> vector<8x256xf32>
    %33 = arith.addf %27, %32 : vector<8x256xf32>
    %34 = vector.extract_strided_slice %1 {offsets = [0, 1, 2], sizes = [4, 16, 16], strides = [1, 1, 1]} : vector<4x18x18xf32> to vector<4x16x16xf32>
    %35 = vector.extract_strided_slice %2 {offsets = [5, 0, 0], sizes = [1, 8, 4], strides = [1, 1, 1]} : vector<9x8x4xf32> to vector<1x8x4xf32>
    %36 = vector.shape_cast %35 : vector<1x8x4xf32> to vector<8x4xf32>
    %37 = vector.shape_cast %34 : vector<4x16x16xf32> to vector<4x256xf32>
    %cst_11 = arith.constant dense<0.000000e+00> : vector<8x256xf32>
    %38 = tpu.matmul %36, %37, %cst_11 {dimension_numbers = #tpu.dot_dimension_numbers<[1], [0], [0], [1], [0, 0, 1, 1], [], []>} : vector<8x4xf32>, vector<4x256xf32>, vector<8x256xf32> -> vector<8x256xf32>
    %39 = arith.addf %33, %38 : vector<8x256xf32>
    %40 = vector.extract_strided_slice %1 {offsets = [0, 2, 0], sizes = [4, 16, 16], strides = [1, 1, 1]} : vector<4x18x18xf32> to vector<4x16x16xf32>
    %41 = vector.extract_strided_slice %2 {offsets = [6, 0, 0], sizes = [1, 8, 4], strides = [1, 1, 1]} : vector<9x8x4xf32> to vector<1x8x4xf32>
    %42 = vector.shape_cast %41 : vector<1x8x4xf32> to vector<8x4xf32>
    %43 = vector.shape_cast %40 : vector<4x16x16xf32> to vector<4x256xf32>
    %cst_12 = arith.constant dense<0.000000e+00> : vector<8x256xf32>
    %44 = tpu.matmul %42, %43, %cst_12 {dimension_numbers = #tpu.dot_dimension_numbers<[1], [0], [0], [1], [0, 0, 1, 1], [], []>} : vector<8x4xf32>, vector<4x256xf32>, vector<8x256xf32> -> vector<8x256xf32>
    %45 = arith.addf %39, %44 : vector<8x256xf32>
    %46 = vector.extract_strided_slice %1 {offsets = [0, 2, 1], sizes = [4, 16, 16], strides = [1, 1, 1]} : vector<4x18x18xf32> to vector<4x16x16xf32>
    %47 = vector.extract_strided_slice %2 {offsets = [7, 0, 0], sizes = [1, 8, 4], strides = [1, 1, 1]} : vector<9x8x4xf32> to vector<1x8x4xf32>
    %48 = vector.shape_cast %47 : vector<1x8x4xf32> to vector<8x4xf32>
    %49 = vector.shape_cast %46 : vector<4x16x16xf32> to vector<4x256xf32>
    %cst_13 = arith.constant dense<0.000000e+00> : vector<8x256xf32>
    %50 = tpu.matmul %48, %49, %cst_13 {dimension_numbers = #tpu.dot_dimension_numbers<[1], [0], [0], [1], [0, 0, 1, 1], [], []>} : vector<8x4xf32>, vector<4x256xf32>, vector<8x256xf32> -> vector<8x256xf32>
    %51 = arith.addf %45, %50 : vector<8x256xf32>
    %52 = vector.extract_strided_slice %1 {offsets = [0, 2, 2], sizes = [4, 16, 16], strides = [1, 1, 1]} : vector<4x18x18xf32> to vector<4x16x16xf32>
    %53 = vector.extract_strided_slice %2 {offsets = [8, 0, 0], sizes = [1, 8, 4], strides = [1, 1, 1]} : vector<9x8x4xf32> to vector<1x8x4xf32>
    %54 = vector.shape_cast %53 : vector<1x8x4xf32> to vector<8x4xf32>
    %55 = vector.shape_cast %52 : vector<4x16x16xf32> to vector<4x256xf32>
    %cst_14 = arith.constant dense<0.000000e+00> : vector<8x256xf32>
    %56 = tpu.matmul %54, %55, %cst_14 {dimension_numbers = #tpu.dot_dimension_numbers<[1], [0], [0], [1], [0, 0, 1, 1], [], []>} : vector<8x4xf32>, vector<4x256xf32>, vector<8x256xf32> -> vector<8x256xf32>
    %57 = arith.addf %51, %56 : vector<8x256xf32>
    %c0_15 = arith.constant 0 : index
    %c0_16 = arith.constant 0 : index
    %58 = vector.load %arg3[%c0_15, %c0_16] : memref<8x1xf32, #tpu.memory_space<vmem>>, vector<8x1xf32>
    %59 = vector.broadcast %58 : vector<8x1xf32> to vector<8x256xf32>
    %60 = arith.addf %57, %59 : vector<8x256xf32>
    %cst_17 = arith.constant 0.000000e+00 : f32
    %61 = vector.broadcast %cst_17 : f32 to vector<8x256xf32>
    %62 = arith.maximumf %60, %61 : vector<8x256xf32>
    %c0_18 = arith.constant 0 : index
    %c0_19 = arith.constant 0 : index
    %c0_20 = arith.constant 0 : index
    %63 = vector.load %arg4[%c0_18, %c0_19, %c0_20] : memref<1x8x256xf32, #tpu.memory_space<vmem>>, vector<1x8x256xf32>
    %64 = vector.shape_cast %63 : vector<1x8x256xf32> to vector<8x256xf32>
    %65 = vector.shape_cast %62 : vector<8x256xf32> to vector<1x8x256xf32>
    tpu.vector_store %arg4[%c0_18, %c0_19, %c0_20], %65 {strides = array<i32>} : memref<1x8x256xf32, #tpu.memory_space<vmem>>, vector<1x8x256xf32>,
    return
  }
  func.func @transform_0(%arg0: i32) -> (i32, i32, i32, i32) {
    %c0_i32 = arith.constant 0 : i32
    %c0_i32_0 = arith.constant 0 : i32
    %c0_i32_1 = arith.constant 0 : i32
    %c0_i32_2 = arith.constant 0 : i32
    return %arg0, %c0_i32, %c0_i32_0, %c0_i32_1 : i32, i32, i32, i32
  }
  func.func @transform_1(%arg0: i32) -> (i32, i32, i32) {
    %c0_i32 = arith.constant 0 : i32
    %c0_i32_0 = arith.constant 0 : i32
    %c0_i32_1 = arith.constant 0 : i32
    %c0_i32_2 = arith.constant 0 : i32
    return %c0_i32, %c0_i32_0, %c0_i32_1 : i32, i32, i32
  }
  func.func @transform_2(%arg0: i32) -> (i32, i32) {
    %c0_i32 = arith.constant 0 : i32
    %c0_i32_0 = arith.constant 0 : i32
    %c0_i32_1 = arith.constant 0 : i32
    return %c0_i32, %c0_i32_0 : i32, i32
  }
  func.func @transform_3(%arg0: i32) -> (i32, i32, i32) {
    %c0_i32 = arith.constant 0 : i32
    %c0_i32_0 = arith.constant 0 : i32
    %c0_i32_1 = arith.constant 0 : i32
    return %arg0, %c0_i32, %c0_i32_0 : i32, i32, i32
  }
}

</mosaic_0001>

<llo_original>
// kernel: tpu_custom_call.1
$region0: #{tpu_custom_call.1}
  #allocation0 [shape = 'u32[]', space=smem, size = 0x4, offset = 0x4, fixed_abs, tag = 'smem constant byte address 0x4 - core index']
  #allocation1 [shape = 'u32[72,128]{1,0:T(1,128)}', space=vmem, size = 0x9000, scoped, tag = 'internal scratch']
  %s0 = inlined_call_operand.hbm [shape: f32[4,256], index: 0, kind: input, shape index: {}]
  %s1 = inlined_call_operand.hbm [shape: f32[4,256], index: 1, kind: output, shape index: {}]
  %s2 = sld [smem:[#allocation0]]
  $region18: #{tpu_custom_call.1} parent=0
    _
  %s4 = ssub.s32 1, %s2
  %s5 = scalar_select 0, %s4, %s2
  $region1: #{tpu_custom_call.1} parent=0
    #allocation2 [shape = 'u8[4096]{0}', space=vmem, size = 0x1000, scoped, tag = 'input window, operand 0, single buffered']
    #allocation3 [shape = 's32[1]{0}', space=sflag, size = 0x4, scoped, tag = 'scoped memory for tpu_custom_call.1']
    #allocation4 [shape = 's32[1]{0}', space=sflag, size = 0x4, scoped, tag = 'scoped memory for tpu_custom_call.1']
    #allocation5 [shape = 'u8[4096]{0}', space=vmem, size = 0x1000, scoped, tag = 'output window, operand 0, single buffered']
    %6 = vsyncpa [#allocation3], 0
    %7 = vsyncpa [#allocation4], 0
    // Predicated region
    $region2: #{tpu_custom_call.1} parent=1 // pred_check
      _
    $region3: #{tpu_custom_call.1} parent=1 // pred_check_branch
      %9 = sbr.rel (0) target = $region5
    $region4: #{tpu_custom_call.1} parent=1 // pred_region
      %11 = vsyncadd [#allocation3], 0
      %s13 = sshll.u32 %s0, 4
      %s14 = int_to_ptr.hbm [resolvable:$true] %s13
      %s15 = sshll.u32 [#allocation2], 4
      %s16 = int_to_ptr.vmem [resolvable:$true] %s15
      %18 = dma.hbm_to_vmem [thread:$0]  %s14, 128, %s16, [#allocation3]
    $region5: #{tpu_custom_call.1} parent=1 // pred_fallthru
      _
    // Predicated region
    $region6: #{tpu_custom_call.1} parent=1 // pred_check
      _
    $region7: #{tpu_custom_call.1} parent=1 // pred_check_branch
      %20 = sbr.rel (0) target = $region9
    $region8: #{tpu_custom_call.1} parent=1 // pred_region
      %22 = dma.done [#allocation3], 128
    $region9: #{tpu_custom_call.1} parent=1 // pred_fallthru
      _
    %v23 = vld [vmem:[#allocation2] sm:$0xff]
    %25 = vst [vmem:[#allocation1] ss:$2 sm:$0xff] %v23
    %v26 = vld.sshfl [vmem:[#allocation1] sm:$0xff pattern:$0x75316420]
    %v27 = vld.sshfl [vmem:[#allocation1 + $0x8] sm:$0xff pattern:$0x75316420]
    %30 = vrot.lane.b32.xlu0 %v26, 19
    %v31 = vpop.permute.xlu0 %30
    %32 = vrot.lane.b32.xlu0 %v27, 19
    %v33 = vpop.permute.xlu0 %32
    %v34 = vlaneseq
    %v35 = vand.u32 %v34, 127
    %vm36 = vcmp.lt.s32.totalorder %v35, 19
    %v37 = vsel %vm36, %v31, %v33
    %v38 = vsel %vm36, %v33, %v31
    %v41 = vrot.slane %v37, 4
    %vm42 = vcmask 1043456
    %v43 = vsel %vm42, %v38, %v41
    %45 = vst [vmem:[#allocation5] sm:$0xff] %v43
    // Predicated region
    $region10: #{tpu_custom_call.1} parent=1 // pred_check
      _
    $region11: #{tpu_custom_call.1} parent=1 // pred_check_branch
      %47 = sbr.rel (0) target = $region13
    $region12: #{tpu_custom_call.1} parent=1 // pred_region
      %49 = vsyncadd [#allocation4], 0
      %s51 = sshll.u32 [#allocation5], 4
      %s52 = int_to_ptr.vmem [resolvable:$true] %s51
      %s53 = sshll.u32 %s1, 4
      %s54 = int_to_ptr.hbm [resolvable:$true] %s53
      %56 = dma.vmem_to_hbm [thread:$0]  %s52, 128, %s54, [#allocation4]
    $region13: #{tpu_custom_call.1} parent=1 // pred_fallthru
      _
    // Predicated region
    $region14: #{tpu_custom_call.1} parent=1 // pred_check
      _
    $region15: #{tpu_custom_call.1} parent=1 // pred_check_branch
      %58 = sbr.rel (0) target = $region17
    $region16: #{tpu_custom_call.1} parent=1 // pred_region
      %60 = dma.done [#allocation4], 128
    $region17: #{tpu_custom_call.1} parent=1 // pred_fallthru
      _
    %61 = vsyncpa [#allocation3], 1
    %62 = vsyncpa [#allocation4], 1

// kernel: tpu_custom_call.1
$region0: #{tpu_custom_call.1}
  #allocation0 [shape = 'u32[]', space=smem, size = 0x4, offset = 0x4, fixed_abs, tag = 'smem constant byte address 0x4 - core index']
  #allocation1 [shape = 'u32[72,128]{1,0:T(1,128)}', space=vmem, size = 0x9000, scoped, tag = 'internal scratch']
  %s0 = inlined_call_operand.vmem [shape: f32[2,4,18,18], index: 0, kind: input, shape index: {}]
  %s1 = inlined_call_operand.vmem [shape: f32[9,8,4], index: 1, kind: input, shape index: {}]
  %s2 = inlined_call_operand.vmem [shape: f32[8,1], index: 2, kind: input, shape index: {}]
  %s3 = inlined_call_operand.hbm [shape: f32[2,8,256], index: 3, kind: output, shape index: {}]
  %s4 = sld [smem:[#allocation0]]
  $region45: #{tpu_custom_call.1} parent=0
    _
  %s6 = ssub.s32 1, %s4
  %s7 = scalar_select 0, %s6, %s4
  $region1: #{tpu_custom_call.1} parent=0
    #allocation2 [shape = 'u8[16384]{0}', space=vmem, size = 0x4000, scoped, tag = 'output window, operand 0']
    #allocation3 [shape = 's32[2]{0}', space=sflag, size = 0x8, scoped, tag = 'scoped memory for tpu_custom_call.1']
    %8 = vsyncpa [#allocation3], 0
    %s9 = scalar_lea.sflag [#allocation3], 1
    %10 = vsyncpa %s9, 0
    loop: start=0, step=1, limit=4
    $region2: #{tpu_custom_call.1} parent=1 // loop_pre_header
      _
    $region3: #{tpu_custom_call.1} parent=1 // loop_header
      %s12 = sphi 0, %s16
      %p13 = scmp.ge.s32.totalorder %s12, 4
      %s22 = sphi 0, %s24
      %s25 = sphi 0, %s22
      %s26 = sphi 0, %s25
      %s42 = sphi 0, %s26
      %s46 = sphi 0, %s46
      %s48 = sphi 0, %s46
      %s49 = sphi 0, %s48
      %s63 = sphi 0, %s49
      %s67 = sphi 0, %s67
      %s69 = sphi 0, %s67
      %s70 = sphi 0, %s69
      %s84 = sphi 0, %s70
      %s90 = sphi 0, %s92
      %s93 = sphi 0, %s90
      %s94 = sphi 0, %s93
      %s110 = sphi 0, %s94
    $region4: #{tpu_custom_call.1} parent=1 // loop_header_branch
      %15 = sbr.rel (%p13) target = $region8
    $region5: #{tpu_custom_call.1} parent=1 // loop_body
      %s17 = ssub.s32 %s12, 1
      %s18 = ssub.s32 %s12, 2
      %s19 = sadd.s32 %s12, 1
      %s20 = ssub.s32 %s12, %s19
      %p21 = scmp.eq.s32.totalorder %s20, 0
      %s23 = sadd.s32 %s22, 1
      %s24 = scalar_select %p21, %s22, %s23
      %p27 = pneg %p21
      %p28 = scmp.eq.s32.totalorder %s12, 1
      %p29 = por %p27, %p28
      %p30 = scmp.ne.s32.totalorder %s22, %s25
      %p31 = scmp.eq.s32.totalorder %s12, 0
      %p32 = por %p30, %p31
      %p33 = scmp.ne.s32.totalorder %s22, %s25
      %p34 = scmp.eq.s32.totalorder %s17, 1
      %p35 = por %p33, %p34
      %p36 = scmp.ne.s32.totalorder %s25, %s26
      %p37 = scmp.eq.s32.totalorder %s17, 0
      %p38 = por %p36, %p37
      %p39 = scmp.ne.s32.totalorder %s25, %s26
      %p40 = scmp.eq.s32.totalorder %s18, 1
      %p41 = por %p39, %p40
      %p43 = scmp.ne.s32.totalorder %s26, %s42
      %p44 = scmp.eq.s32.totalorder %s18, 0
      %p45 = por %p43, %p44
      %s47 = sadd.s32 %s46, 1
      %p50 = scmp.eq.s32.totalorder %s12, 1
      %p51 = scmp.ne.s32.totalorder %s46, %s48
      %p52 = scmp.eq.s32.totalorder %s12, 0
      %p53 = por %p51, %p52
      %p54 = scmp.ne.s32.totalorder %s46, %s48
      %p55 = scmp.eq.s32.totalorder %s17, 1
      %p56 = por %p54, %p55
      %p57 = scmp.ne.s32.totalorder %s48, %s49
      %p58 = scmp.eq.s32.totalorder %s17, 0
      %p59 = por %p57, %p58
      %p60 = scmp.ne.s32.totalorder %s48, %s49
      %p61 = scmp.eq.s32.totalorder %s18, 1
      %p62 = por %p60, %p61
      %p64 = scmp.ne.s32.totalorder %s49, %s63
      %p65 = scmp.eq.s32.totalorder %s18, 0
      %p66 = por %p64, %p65
      %s68 = sadd.s32 %s67, 1
      %p71 = scmp.eq.s32.totalorder %s12, 1
      %p72 = scmp.ne.s32.totalorder %s67, %s69
      %p73 = scmp.eq.s32.totalorder %s12, 0
      %p74 = por %p72, %p73
      %p75 = scmp.ne.s32.totalorder %s67, %s69
      %p76 = scmp.eq.s32.totalorder %s17, 1
      %p77 = por %p75, %p76
      %p78 = scmp.ne.s32.totalorder %s69, %s70
      %p79 = scmp.eq.s32.totalorder %s17, 0
      %p80 = por %p78, %p79
      %p81 = scmp.ne.s32.totalorder %s69, %s70
      %p82 = scmp.eq.s32.totalorder %s18, 1
      %p83 = por %p81, %p82
      %p85 = scmp.ne.s32.totalorder %s70, %s84
      %p86 = scmp.eq.s32.totalorder %s18, 0
      %p87 = por %p85, %p86
      %s88 = ssub.s32 %s12, %s19
      %p89 = scmp.eq.s32.totalorder %s88, 0
      %s91 = sadd.s32 %s90, 1
      %s92 = scalar_select %p89, %s90, %s91
      %p95 = pneg %p89
      %p96 = scmp.eq.s32.totalorder %s12, 1
      %p97 = por %p95, %p96
      %p98 = scmp.ne.s32.totalorder %s90, %s93
      %p99 = scmp.eq.s32.totalorder %s12, 0
      %p100 = por %p98, %p99
      %p101 = scmp.ne.s32.totalorder %s90, %s93
      %p102 = scmp.eq.s32.totalorder %s17, 1
      %p103 = por %p101, %p102
      %p104 = scmp.ne.s32.totalorder %s93, %s94
      %p105 = scmp.eq.s32.totalorder %s17, 0
      %p106 = por %p104, %p105
      %p107 = scmp.ne.s32.totalorder %s93, %s94
      %p108 = scmp.eq.s32.totalorder %s18, 1
      %p109 = por %p107, %p108
      %p111 = scmp.ne.s32.totalorder %s94, %s110
      %p112 = scmp.eq.s32.totalorder %s18, 0
      %p113 = por %p111, %p112
      %p114 = scmp.le.s32.totalorder 1, %s12
      %p115 = scmp.lt.s32.totalorder %s12, 3
      %p116 = pnand %p114, %p115
      %p117 = pneg %p116
      // Predicated region
      $region9: #{tpu_custom_call.1} parent=5 // pred_check
        _
      $region10: #{tpu_custom_call.1} parent=5 // pred_check_branch
        %119 = sbr.rel (%p116) target = $region12
      $region11: #{tpu_custom_call.1} parent=5 // pred_region
        %s120 = ssub.s32 %s12, 1
        // Predicated region
        $region13: #{tpu_custom_call.1} parent=11 // pred_check
          %p121 = pneg %p59
        $region14: #{tpu_custom_call.1} parent=11 // pred_check_branch
          %123 = sbr.rel (%p121) target = $region16
        $region15: #{tpu_custom_call.1} parent=11 // pred_region
          _
        $region16: #{tpu_custom_call.1} parent=11 // pred_fallthru
          _
        // Predicated region
        $region17: #{tpu_custom_call.1} parent=11 // pred_check
          %p124 = pneg %p80
        $region18: #{tpu_custom_call.1} parent=11 // pred_check_branch
          %126 = sbr.rel (%p124) target = $region20
        $region19: #{tpu_custom_call.1} parent=11 // pred_region
          _
        $region20: #{tpu_custom_call.1} parent=11 // pred_fallthru
          _
      $region12: #{tpu_custom_call.1} parent=5 // pred_fallthru
        _
      %p127 = scmp.lt.s32.totalorder %s12, 2
      // Predicated region
      $region21: #{tpu_custom_call.1} parent=5 // pred_check
        %p128 = pneg %p127
      $region22: #{tpu_custom_call.1} parent=5 // pred_check_branch
        %130 = sbr.rel (%p128) target = $region24
      $region23: #{tpu_custom_call.1} parent=5 // pred_region
        // Predicated region
        $region25: #{tpu_custom_call.1} parent=23 // pred_check
          %p131 = pneg %p32
        $region26: #{tpu_custom_call.1} parent=23 // pred_check_branch
          %133 = sbr.rel (%p131) target = $region28
        $region27: #{tpu_custom_call.1} parent=23 // pred_region
          %p134 = scmp.lt.s32.totalorder %s12, 1
          %s135 = scalar_select %p134, %s12, 1
          %s136 = smul.addr %s135, 12
          %s137 = smul.addr %s136, 8
          %s138 = scalar_lea.vmem %s0, %s137
        $region28: #{tpu_custom_call.1} parent=23 // pred_fallthru
          _
      $region24: #{tpu_custom_call.1} parent=5 // pred_fallthru
        _
      %p139 = scmp.le.s32.totalorder 1, %s12
      %p140 = scmp.lt.s32.totalorder %s12, 3
      %p141 = pnand %p139, %p140
      %p142 = pneg %p141
      // Predicated region
      $region29: #{tpu_custom_call.1} parent=5 // pred_check
        _
      $region30: #{tpu_custom_call.1} parent=5 // pred_check_branch
        %144 = sbr.rel (%p141) target = $region32
      $region31: #{tpu_custom_call.1} parent=5 // pred_region
        %s145 = ssub.s32 %s12, 1
        %p146 = scmp.lt.s32.totalorder %s17, 1
        %s147 = scalar_select %p146, %s17, 1
        %s148 = smul.addr %s147, 12
        %s149 = smul.addr %s148, 8
        %s150 = scalar_lea.vmem %s0, %s149
        %p151 = pneg %p38
        %p152 = pneg %p35
        %p153 = pneg %p59
        %p154 = pneg %p56
        %p155 = pneg %p80
        %p156 = pneg %p77
        %p157 = pneg %p106
        %p158 = pneg %p103
        %s159 = sand.u32 %s93, 1
        %s160 = scalar_lea.sflag [#allocation3], %s159
        %s161 = sand.u32 %s93, 1
        %s162 = smul.addr %s161, 16
        %s163 = scalar_lea.vmem [#allocation2], %s162
        %p164 = scmp.lt.s32.totalorder %s17, 1
        %s165 = scalar_select %p164, %s17, 1
        %s166 = smul.addr %s165, 12
        %s167 = smul.addr %s166, 8
        %s168 = scalar_lea.vmem %s0, %s167
        %v169 = vld [vmem:[%s168] sm:$0xff]
        %v170 = vld [vmem:[%s168 + $0x8] sm:$0xff]
        %v171 = vld [vmem:[%s168 + $0x10] sm:$0x3]
        %v172 = vld [vmem:[%s168 + $0x18] sm:$0xff]
        %v173 = vld [vmem:[%s168 + $0x20] sm:$0xff]
        %v174 = vld [vmem:[%s168 + $0x28] sm:$0x3]
        %v175 = vld [vmem:[%s168 + $0x30] sm:$0xff]
        %v176 = vld [vmem:[%s168 + $0x38] sm:$0xff]
        %v177 = vld [vmem:[%s168 + $0x40] sm:$0x3]
        %v178 = vld [vmem:[%s168 + $0x48] sm:$0xff]
        %v179 = vld [vmem:[%s168 + $0x50] sm:$0xff]
        %v180 = vld [vmem:[%s168 + $0x58] sm:$0x3]
        %v181 = vld [vmem:[%s1] sm:$0xff]
        %v182 = vld [vmem:[%s1 + $0x8] sm:$0xff]
        %v183 = vld [vmem:[%s1 + $0x10] sm:$0xff]
        %v184 = vld [vmem:[%s1 + $0x18] sm:$0xff]
        %v185 = vld [vmem:[%s1 + $0x20] sm:$0xff]
        %v186 = vld [vmem:[%s1 + $0x28] sm:$0xff]
        %v187 = vld [vmem:[%s1 + $0x30] sm:$0xff]
        %v188 = vld [vmem:[%s1 + $0x38] sm:$0xff]
        %v189 = vld [vmem:[%s1 + $0x40] sm:$0xff]
        %v190 = vrot.slane %v175, 4
        %vm191 = vcmask 1047556
        %v192 = vsel %vm191, %v190, %v169
        %v193 = vrot.slane %v169, 4
        %v194 = vsel %vm191, %v175, %v193
        %v196 = vunpack.c.l.s4 1983009808
        %v197 = vunpack.c.0.s8 %v196
        %v198 = vperm.slane %v192, %v197
        %v200 = vunpack.c.l.s4 1983009808
        %v201 = vunpack.c.0.s8 %v200
        %v202 = vperm.slane %v194, %v201
        %v203 = vrot.slane %v178, 4
        %v204 = vsel %vm191, %v203, %v172
        %v205 = vrot.slane %v172, 4
        %v206 = vsel %vm191, %v178, %v205
        %v208 = vunpack.c.l.s4 1983009808
        %v209 = vunpack.c.0.s8 %v208
        %v210 = vperm.slane %v204, %v209
        %v212 = vunpack.c.l.s4 1983009808
        %v213 = vunpack.c.0.s8 %v212
        %v214 = vperm.slane %v206, %v213
        %v215 = vrot.slane %v210, 4
        %v216 = vsel %vm191, %v215, %v198
        %v217 = vrot.slane %v198, 4
        %v218 = vsel %vm191, %v210, %v217
        %v220 = vunpack.c.l.s4 1934713408
        %v221 = vunpack.c.0.s8 %v220
        %v222 = vperm.slane %v216, %v221
        %v224 = vunpack.c.l.s4 1934713408
        %v225 = vunpack.c.0.s8 %v224
        %v226 = vperm.slane %v218, %v225
        %v227 = vrot.slane %v214, 4
        %v228 = vsel %vm191, %v227, %v202
        %v229 = vrot.slane %v202, 4
        %v230 = vsel %vm191, %v214, %v229
        %v232 = vunpack.c.l.s4 1934713408
        %v233 = vunpack.c.0.s8 %v232
        %v234 = vperm.slane %v228, %v233
        %v236 = vunpack.c.l.s4 1934713408
        %v237 = vunpack.c.0.s8 %v236
        %v238 = vperm.slane %v230, %v237
        %v239 = vrot.slane %v222, 4
        %v240 = vsel %vm191, 0.0, %v239
        %v241 = vrot.slane %v226, 4
        %v242 = vsel %vm191, 0.0, %v241
        %v243 = vrot.slane %v234, 4
        %v244 = vsel %vm191, 0.0, %v243
        %v245 = vrot.slane %v238, 4
        %v246 = vsel %vm191, 0.0, %v245
        %v247 = vrot.slane %v176, 4
        %v248 = vsel %vm191, %v247, %v170
        %v249 = vrot.slane %v170, 4
        %v250 = vsel %vm191, %v176, %v249
        %v252 = vunpack.c.l.s4 1983009808
        %v253 = vunpack.c.0.s8 %v252
        %v254 = vperm.slane %v248, %v253
        %v256 = vunpack.c.l.s4 1983009808
        %v257 = vunpack.c.0.s8 %v256
        %v258 = vperm.slane %v250, %v257
        %v259 = vrot.slane %v179, 4
        %v260 = vsel %vm191, %v259, %v173
        %v261 = vrot.slane %v173, 4
        %v262 = vsel %vm191, %v179, %v261
        %v264 = vunpack.c.l.s4 1983009808
        %v265 = vunpack.c.0.s8 %v264
        %v266 = vperm.slane %v260, %v265
        %v268 = vunpack.c.l.s4 1983009808
        %v269 = vunpack.c.0.s8 %v268
        %v270 = vperm.slane %v262, %v269
        %v271 = vrot.slane %v266, 4
        %v272 = vsel %vm191, %v271, %v254
        %v273 = vrot.slane %v254, 4
        %v274 = vsel %vm191, %v266, %v273
        %v276 = vunpack.c.l.s4 1934713408
        %v277 = vunpack.c.0.s8 %v276
        %v278 = vperm.slane %v272, %v277
        %v280 = vunpack.c.l.s4 1934713408
        %v281 = vunpack.c.0.s8 %v280
        %v282 = vperm.slane %v274, %v281
        %v283 = vrot.slane %v270, 4
        %v284 = vsel %vm191, %v283, %v258
        %v285 = vrot.slane %v258, 4
        %v286 = vsel %vm191, %v270, %v285
        %v288 = vunpack.c.l.s4 1934713408
        %v289 = vunpack.c.0.s8 %v288
        %v290 = vperm.slane %v284, %v289
        %v292 = vunpack.c.l.s4 1934713408
        %v293 = vunpack.c.0.s8 %v292
        %v294 = vperm.slane %v286, %v293
        %v295 = vrot.slane %v278, 4
        %v296 = vsel %vm191, 0.0, %v295
        %v297 = vrot.slane %v282, 4
        %v298 = vsel %vm191, 0.0, %v297
        %v299 = vrot.slane %v290, 4
        %v300 = vsel %vm191, 0.0, %v299
        %v301 = vrot.slane %v294, 4
        %v302 = vsel %vm191, 0.0, %v301
        %304 = vrot.lane.b32.xlu0 %v240, 16
        %v305 = vpop.permute.xlu0 %304
        %308 = vrot.lane.b32.xlu0 %v226, 32
        %v309 = vpop.permute.xlu0 %308
        %312 = vrot.lane.b32.xlu0 %v242, 48
        %v313 = vpop.permute.xlu0 %312
        %316 = vrot.lane.b32.xlu0 %v234, 64
        %v317 = vpop.permute.xlu0 %316
        %320 = vrot.lane.b32.xlu0 %v244, 80
        %v321 = vpop.permute.xlu0 %320
        %324 = vrot.lane.b32.xlu0 %v238, 96
        %v325 = vpop.permute.xlu0 %324
        %328 = vrot.lane.b32.xlu0 %v246, 112
        %v329 = vpop.permute.xlu0 %328
        %332 = vrot.lane.b32.xlu0 %v296, 16
        %v333 = vpop.permute.xlu0 %332
        %336 = vrot.lane.b32.xlu0 %v282, 32
        %v337 = vpop.permute.xlu0 %336
        %340 = vrot.lane.b32.xlu0 %v298, 48
        %v341 = vpop.permute.xlu0 %340
        %344 = vrot.lane.b32.xlu0 %v290, 64
        %v345 = vpop.permute.xlu0 %344
        %348 = vrot.lane.b32.xlu0 %v300, 80
        %v349 = vpop.permute.xlu0 %348
        %352 = vrot.lane.b32.xlu0 %v294, 96
        %v353 = vpop.permute.xlu0 %352
        %356 = vrot.lane.b32.xlu0 %v302, 112
        %v357 = vpop.permute.xlu0 %356
        %vm359 = vcmask 130048
        %v360 = vsel %vm359, %v222, %v305
        %vm361 = vcmask 261120
        %v362 = vsel %vm361, %v360, %v309
        %vm363 = vcmask 392192
        %v364 = vsel %vm363, %v362, %v313
        %vm365 = vcmask 523264
        %v366 = vsel %vm365, %v364, %v317
        %vm367 = vcmask 654336
        %v368 = vsel %vm367, %v366, %v321
        %vm369 = vcmask 785408
        %v370 = vsel %vm369, %v368, %v325
        %vm371 = vcmask 916480
        %v372 = vsel %vm371, %v370, %v329
        %v373 = vsel %vm359, %v278, %v333
        %v374 = vsel %vm361, %v373, %v337
        %v375 = vsel %vm363, %v374, %v341
        %v376 = vsel %vm365, %v375, %v345
        %v377 = vsel %vm367, %v376, %v349
        %v378 = vsel %vm369, %v377, %v353
        %v379 = vsel %vm371, %v378, %v357
        %388 = vrot.lane.b32.xlu0 %v169, 127
        %v389 = vpop.permute.xlu0 %388
        %390 = vrot.lane.b32.xlu0 %v170, 127
        %v391 = vpop.permute.xlu0 %390
        %392 = vrot.lane.b32.xlu0 %v172, 127
        %v393 = vpop.permute.xlu0 %392
        %394 = vrot.lane.b32.xlu0 %v173, 127
        %v395 = vpop.permute.xlu0 %394
        %396 = vrot.lane.b32.xlu0 %v175, 127
        %v397 = vpop.permute.xlu0 %396
        %398 = vrot.lane.b32.xlu0 %v176, 127
        %v399 = vpop.permute.xlu0 %398
        %400 = vrot.lane.b32.xlu0 %v178, 127
        %v401 = vpop.permute.xlu0 %400
        %402 = vrot.lane.b32.xlu0 %v179, 127
        %v403 = vpop.permute.xlu0 %402
        %v412 = vrot.slane %v397, 4
        %v413 = vsel %vm191, %v412, %v389
        %v414 = vrot.slane %v389, 4
        %v415 = vsel %vm191, %v397, %v414
        %v417 = vunpack.c.l.s4 1983009808
        %v418 = vunpack.c.0.s8 %v417
        %v419 = vperm.slane %v413, %v418
        %v421 = vunpack.c.l.s4 1983009808
        %v422 = vunpack.c.0.s8 %v421
        %v423 = vperm.slane %v415, %v422
        %v424 = vrot.slane %v401, 4
        %v425 = vsel %vm191, %v424, %v393
        %v426 = vrot.slane %v393, 4
        %v427 = vsel %vm191, %v401, %v426
        %v429 = vunpack.c.l.s4 1983009808
        %v430 = vunpack.c.0.s8 %v429
        %v431 = vperm.slane %v425, %v430
        %v433 = vunpack.c.l.s4 1983009808
        %v434 = vunpack.c.0.s8 %v433
        %v435 = vperm.slane %v427, %v434
        %v436 = vrot.slane %v431, 4
        %v437 = vsel %vm191, %v436, %v419
        %v438 = vrot.slane %v419, 4
        %v439 = vsel %vm191, %v431, %v438
        %v441 = vunpack.c.l.s4 1934713408
        %v442 = vunpack.c.0.s8 %v441
        %v443 = vperm.slane %v437, %v442
        %v445 = vunpack.c.l.s4 1934713408
        %v446 = vunpack.c.0.s8 %v445
        %v447 = vperm.slane %v439, %v446
        %v448 = vrot.slane %v435, 4
        %v449 = vsel %vm191, %v448, %v423
        %v450 = vrot.slane %v423, 4
        %v451 = vsel %vm191, %v435, %v450
        %v453 = vunpack.c.l.s4 1934713408
        %v454 = vunpack.c.0.s8 %v453
        %v455 = vperm.slane %v449, %v454
        %v457 = vunpack.c.l.s4 1934713408
        %v458 = vunpack.c.0.s8 %v457
        %v459 = vperm.slane %v451, %v458
        %v460 = vrot.slane %v443, 4
        %v461 = vsel %vm191, 0.0, %v460
        %v462 = vrot.slane %v447, 4
        %v463 = vsel %vm191, 0.0, %v462
        %v464 = vrot.slane %v455, 4
        %v465 = vsel %vm191, 0.0, %v464
        %v466 = vrot.slane %v459, 4
        %v467 = vsel %vm191, 0.0, %v466
        %v468 = vrot.slane %v399, 4
        %v469 = vsel %vm191, %v468, %v391
        %v470 = vrot.slane %v391, 4
        %v471 = vsel %vm191, %v399, %v470
        %v473 = vunpack.c.l.s4 1983009808
        %v474 = vunpack.c.0.s8 %v473
        %v475 = vperm.slane %v469, %v474
        %v477 = vunpack.c.l.s4 1983009808
        %v478 = vunpack.c.0.s8 %v477
        %v479 = vperm.slane %v471, %v478
        %v480 = vrot.slane %v403, 4
        %v481 = vsel %vm191, %v480, %v395
        %v482 = vrot.slane %v395, 4
        %v483 = vsel %vm191, %v403, %v482
        %v485 = vunpack.c.l.s4 1983009808
        %v486 = vunpack.c.0.s8 %v485
        %v487 = vperm.slane %v481, %v486
        %v489 = vunpack.c.l.s4 1983009808
        %v490 = vunpack.c.0.s8 %v489
        %v491 = vperm.slane %v483, %v490
        %v492 = vrot.slane %v487, 4
        %v493 = vsel %vm191, %v492, %v475
        %v494 = vrot.slane %v475, 4
        %v495 = vsel %vm191, %v487, %v494
        %v497 = vunpack.c.l.s4 1934713408
        %v498 = vunpack.c.0.s8 %v497
        %v499 = vperm.slane %v493, %v498
        %v501 = vunpack.c.l.s4 1934713408
        %v502 = vunpack.c.0.s8 %v501
        %v503 = vperm.slane %v495, %v502
        %v504 = vrot.slane %v491, 4
        %v505 = vsel %vm191, %v504, %v479
        %v506 = vrot.slane %v479, 4
        %v507 = vsel %vm191, %v491, %v506
        %v509 = vunpack.c.l.s4 1934713408
        %v510 = vunpack.c.0.s8 %v509
        %v511 = vperm.slane %v505, %v510
        %v513 = vunpack.c.l.s4 1934713408
        %v514 = vunpack.c.0.s8 %v513
        %v515 = vperm.slane %v507, %v514
        %v516 = vrot.slane %v499, 4
        %v517 = vsel %vm191, 0.0, %v516
        %v518 = vrot.slane %v503, 4
        %v519 = vsel %vm191, 0.0, %v518
        %v520 = vrot.slane %v511, 4
        %v521 = vsel %vm191, 0.0, %v520
        %v522 = vrot.slane %v515, 4
        %v523 = vsel %vm191, 0.0, %v522
        %525 = vrot.lane.b32.xlu0 %v461, 16
        %v526 = vpop.permute.xlu0 %525
        %529 = vrot.lane.b32.xlu0 %v447, 32
        %v530 = vpop.permute.xlu0 %529
        %533 = vrot.lane.b32.xlu0 %v463, 48
        %v534 = vpop.permute.xlu0 %533
        %537 = vrot.lane.b32.xlu0 %v455, 64
        %v538 = vpop.permute.xlu0 %537
        %541 = vrot.lane.b32.xlu0 %v465, 80
        %v542 = vpop.permute.xlu0 %541
        %545 = vrot.lane.b32.xlu0 %v459, 96
        %v546 = vpop.permute.xlu0 %545
        %549 = vrot.lane.b32.xlu0 %v467, 112
        %v550 = vpop.permute.xlu0 %549
        %553 = vrot.lane.b32.xlu0 %v517, 16
        %v554 = vpop.permute.xlu0 %553
        %557 = vrot.lane.b32.xlu0 %v503, 32
        %v558 = vpop.permute.xlu0 %557
        %561 = vrot.lane.b32.xlu0 %v519, 48
        %v562 = vpop.permute.xlu0 %561
        %565 = vrot.lane.b32.xlu0 %v511, 64
        %v566 = vpop.permute.xlu0 %565
        %569 = vrot.lane.b32.xlu0 %v521, 80
        %v570 = vpop.permute.xlu0 %569
        %573 = vrot.lane.b32.xlu0 %v515, 96
        %v574 = vpop.permute.xlu0 %573
        %577 = vrot.lane.b32.xlu0 %v523, 112
        %v578 = vpop.permute.xlu0 %577
        %v580 = vsel %vm359, %v443, %v526
        %v581 = vsel %vm361, %v580, %v530
        %v582 = vsel %vm363, %v581, %v534
        %v583 = vsel %vm365, %v582, %v538
        %v584 = vsel %vm367, %v583, %v542
        %v585 = vsel %vm369, %v584, %v546
        %v586 = vsel %vm371, %v585, %v550
        %v587 = vsel %vm359, %v499, %v554
        %v588 = vsel %vm361, %v587, %v558
        %v589 = vsel %vm363, %v588, %v562
        %v590 = vsel %vm365, %v589, %v566
        %v591 = vsel %vm367, %v590, %v570
        %v592 = vsel %vm369, %v591, %v574
        %v593 = vsel %vm371, %v592, %v578
        %vm594 = vcmask 31744
        %v596 = vsel %vm594, %v182, 0
        %vm598 = vcmask 1043456
        %v600 = vsel %vm598, %v586, 0
        %v603 = vsel %vm598, %v593, 0
        %605 = vmatpush.msra.mxu0 0.0
        %606 = vmatpush.msra.mxu0 0.0
        %607 = vmatpush.msra.mxu0 0.0
        %608 = vmatpush.msra.mxu0 0.0
        %609 = vmatpush.msra.mxu0 0.0
        %610 = vmatpush.msra.mxu0 0.0
        %611 = vmatpush.msra.mxu0 0.0
        %612 = vmatpush.msra.mxu0 0.0
        %613 = vmatpush.msra.mxu0 0.0
        %614 = vmatpush.msra.mxu0 0.0
        %615 = vmatpush.msra.mxu0 0.0
        %616 = vmatpush.msra.mxu0 0.0
        %617 = vmatpush.msra.mxu0 0.0
        %618 = vmatpush.msra.mxu0 0.0
        %619 = vmatpush.msra.mxu0 0.0
        %620 = vmatpush.msra.mxu0 %v600
        %621 = vmatmul.f32.gmra.mxu0 %v596
        %v622 = vpop.f32.mrf.mxu0
        %v623 = vadd.f32 0.0, %v622
        %624 = vdwg.mxu0
        %625 = vmatpush.msra.mxu0 0.0
        %626 = vmatpush.msra.mxu0 0.0
        %627 = vmatpush.msra.mxu0 0.0
        %628 = vmatpush.msra.mxu0 0.0
        %629 = vmatpush.msra.mxu0 0.0
        %630 = vmatpush.msra.mxu0 0.0
        %631 = vmatpush.msra.mxu0 0.0
        %632 = vmatpush.msra.mxu0 0.0
        %633 = vmatpush.msra.mxu0 0.0
        %634 = vmatpush.msra.mxu0 0.0
        %635 = vmatpush.msra.mxu0 0.0
        %636 = vmatpush.msra.mxu0 0.0
        %637 = vmatpush.msra.mxu0 0.0
        %638 = vmatpush.msra.mxu0 0.0
        %639 = vmatpush.msra.mxu0 0.0
        %640 = vmatpush.msra.mxu0 %v603
        %641 = vmatmul.f32.gmra.mxu0 %v596
        %v642 = vpop.f32.mrf.mxu0
        %v643 = vadd.f32 0.0, %v642
        %644 = vdwg.mxu0
        %v646 = vsel %vm594, %v181, 0
        %v649 = vsel %vm598, %v372, 0
        %v652 = vsel %vm598, %v379, 0
        %654 = vmatpush.msra.mxu0 0.0
        %655 = vmatpush.msra.mxu0 0.0
        %656 = vmatpush.msra.mxu0 0.0
        %657 = vmatpush.msra.mxu0 0.0
        %658 = vmatpush.msra.mxu0 0.0
        %659 = vmatpush.msra.mxu0 0.0
        %660 = vmatpush.msra.mxu0 0.0
        %661 = vmatpush.msra.mxu0 0.0
        %662 = vmatpush.msra.mxu0 0.0
        %663 = vmatpush.msra.mxu0 0.0
        %664 = vmatpush.msra.mxu0 0.0
        %665 = vmatpush.msra.mxu0 0.0
        %666 = vmatpush.msra.mxu0 0.0
        %667 = vmatpush.msra.mxu0 0.0
        %668 = vmatpush.msra.mxu0 0.0
        %669 = vmatpush.msra.mxu0 %v649
        %670 = vmatmul.f32.gmra.mxu0 %v646
        %v671 = vpop.f32.mrf.mxu0
        %v672 = vadd.f32 %v623, %v671
        %673 = vdwg.mxu0
        %674 = vmatpush.msra.mxu0 0.0
        %675 = vmatpush.msra.mxu0 0.0
        %676 = vmatpush.msra.mxu0 0.0
        %677 = vmatpush.msra.mxu0 0.0
        %678 = vmatpush.msra.mxu0 0.0
        %679 = vmatpush.msra.mxu0 0.0
        %680 = vmatpush.msra.mxu0 0.0
        %681 = vmatpush.msra.mxu0 0.0
        %682 = vmatpush.msra.mxu0 0.0
        %683 = vmatpush.msra.mxu0 0.0
        %684 = vmatpush.msra.mxu0 0.0
        %685 = vmatpush.msra.mxu0 0.0
        %686 = vmatpush.msra.mxu0 0.0
        %687 = vmatpush.msra.mxu0 0.0
        %688 = vmatpush.msra.mxu0 0.0
        %689 = vmatpush.msra.mxu0 %v652
        %690 = vmatmul.f32.gmra.mxu0 %v646
        %v691 = vpop.f32.mrf.mxu0
        %v692 = vadd.f32 %v643, %v691
        %693 = vdwg.mxu0
        %694 = vrot.lane.b32.xlu0 %v169, 126
        %v695 = vpop.permute.xlu0 %694
        %696 = vrot.lane.b32.xlu0 %v170, 126
        %v697 = vpop.permute.xlu0 %696
        %698 = vrot.lane.b32.xlu0 %v172, 126
        %v699 = vpop.permute.xlu0 %698
        %700 = vrot.lane.b32.xlu0 %v173, 126
        %v701 = vpop.permute.xlu0 %700
        %702 = vrot.lane.b32.xlu0 %v175, 126
        %v703 = vpop.permute.xlu0 %702
        %704 = vrot.lane.b32.xlu0 %v176, 126
        %v705 = vpop.permute.xlu0 %704
        %706 = vrot.lane.b32.xlu0 %v178, 126
        %v707 = vpop.permute.xlu0 %706
        %708 = vrot.lane.b32.xlu0 %v179, 126
        %v709 = vpop.permute.xlu0 %708
        %v718 = vrot.slane %v703, 4
        %v719 = vsel %vm191, %v718, %v695
        %v720 = vrot.slane %v695, 4
        %v721 = vsel %vm191, %v703, %v720
        %v723 = vunpack.c.l.s4 1983009808
        %v724 = vunpack.c.0.s8 %v723
        %v725 = vperm.slane %v719, %v724
        %v727 = vunpack.c.l.s4 1983009808
        %v728 = vunpack.c.0.s8 %v727
        %v729 = vperm.slane %v721, %v728
        %v730 = vrot.slane %v707, 4
        %v731 = vsel %vm191, %v730, %v699
        %v732 = vrot.slane %v699, 4
        %v733 = vsel %vm191, %v707, %v732
        %v735 = vunpack.c.l.s4 1983009808
        %v736 = vunpack.c.0.s8 %v735
        %v737 = vperm.slane %v731, %v736
        %v739 = vunpack.c.l.s4 1983009808
        %v740 = vunpack.c.0.s8 %v739
        %v741 = vperm.slane %v733, %v740
        %v742 = vrot.slane %v737, 4
        %v743 = vsel %vm191, %v742, %v725
        %v744 = vrot.slane %v725, 4
        %v745 = vsel %vm191, %v737, %v744
        %v747 = vunpack.c.l.s4 1934713408
        %v748 = vunpack.c.0.s8 %v747
        %v749 = vperm.slane %v743, %v748
        %v751 = vunpack.c.l.s4 1934713408
        %v752 = vunpack.c.0.s8 %v751
        %v753 = vperm.slane %v745, %v752
        %v754 = vrot.slane %v741, 4
        %v755 = vsel %vm191, %v754, %v729
        %v756 = vrot.slane %v729, 4
        %v757 = vsel %vm191, %v741, %v756
        %v759 = vunpack.c.l.s4 1934713408
        %v760 = vunpack.c.0.s8 %v759
        %v761 = vperm.slane %v755, %v760
        %v763 = vunpack.c.l.s4 1934713408
        %v764 = vunpack.c.0.s8 %v763
        %v765 = vperm.slane %v757, %v764
        %v766 = vrot.slane %v749, 4
        %v767 = vsel %vm191, 0.0, %v766
        %v768 = vrot.slane %v753, 4
        %v769 = vsel %vm191, 0.0, %v768
        %v770 = vrot.slane %v761, 4
        %v771 = vsel %vm191, 0.0, %v770
        %v772 = vrot.slane %v765, 4
        %v773 = vsel %vm191, 0.0, %v772
        %v774 = vrot.slane %v705, 4
        %v775 = vsel %vm191, %v774, %v697
        %v776 = vrot.slane %v697, 4
        %v777 = vsel %vm191, %v705, %v776
        %v779 = vunpack.c.l.s4 1983009808
        %v780 = vunpack.c.0.s8 %v779
        %v781 = vperm.slane %v775, %v780
        %v783 = vunpack.c.l.s4 1983009808
        %v784 = vunpack.c.0.s8 %v783
        %v785 = vperm.slane %v777, %v784
        %v786 = vrot.slane %v709, 4
        %v787 = vsel %vm191, %v786, %v701
        %v788 = vrot.slane %v701, 4
        %v789 = vsel %vm191, %v709, %v788
        %v791 = vunpack.c.l.s4 1983009808
        %v792 = vunpack.c.0.s8 %v791
        %v793 = vperm.slane %v787, %v792
        %v795 = vunpack.c.l.s4 1983009808
        %v796 = vunpack.c.0.s8 %v795
        %v797 = vperm.slane %v789, %v796
        %v798 = vrot.slane %v793, 4
        %v799 = vsel %vm191, %v798, %v781
        %v800 = vrot.slane %v781, 4
        %v801 = vsel %vm191, %v793, %v800
        %v803 = vunpack.c.l.s4 1934713408
        %v804 = vunpack.c.0.s8 %v803
        %v805 = vperm.slane %v799, %v804
        %v807 = vunpack.c.l.s4 1934713408
        %v808 = vunpack.c.0.s8 %v807
        %v809 = vperm.slane %v801, %v808
        %v810 = vrot.slane %v797, 4
        %v811 = vsel %vm191, %v810, %v785
        %v812 = vrot.slane %v785, 4
        %v813 = vsel %vm191, %v797, %v812
        %v815 = vunpack.c.l.s4 1934713408
        %v816 = vunpack.c.0.s8 %v815
        %v817 = vperm.slane %v811, %v816
        %v819 = vunpack.c.l.s4 1934713408
        %v820 = vunpack.c.0.s8 %v819
        %v821 = vperm.slane %v813, %v820
        %v822 = vrot.slane %v805, 4
        %v823 = vsel %vm191, 0.0, %v822
        %v824 = vrot.slane %v809, 4
        %v825 = vsel %vm191, 0.0, %v824
        %v826 = vrot.slane %v817, 4
        %v827 = vsel %vm191, 0.0, %v826
        %v828 = vrot.slane %v821, 4
        %v829 = vsel %vm191, 0.0, %v828
        %831 = vrot.lane.b32.xlu0 %v767, 16
        %v832 = vpop.permute.xlu0 %831
        %835 = vrot.lane.b32.xlu0 %v753, 32
        %v836 = vpop.permute.xlu0 %835
        %839 = vrot.lane.b32.xlu0 %v769, 48
        %v840 = vpop.permute.xlu0 %839
        %843 = vrot.lane.b32.xlu0 %v761, 64
        %v844 = vpop.permute.xlu0 %843
        %847 = vrot.lane.b32.xlu0 %v771, 80
        %v848 = vpop.permute.xlu0 %847
        %851 = vrot.lane.b32.xlu0 %v765, 96
        %v852 = vpop.permute.xlu0 %851
        %855 = vrot.lane.b32.xlu0 %v773, 112
        %v856 = vpop.permute.xlu0 %855
        %859 = vrot.lane.b32.xlu0 %v823, 16
        %v860 = vpop.permute.xlu0 %859
        %863 = vrot.lane.b32.xlu0 %v809, 32
        %v864 = vpop.permute.xlu0 %863
        %867 = vrot.lane.b32.xlu0 %v825, 48
        %v868 = vpop.permute.xlu0 %867
        %871 = vrot.lane.b32.xlu0 %v817, 64
        %v872 = vpop.permute.xlu0 %871
        %875 = vrot.lane.b32.xlu0 %v827, 80
        %v876 = vpop.permute.xlu0 %875
        %879 = vrot.lane.b32.xlu0 %v821, 96
        %v880 = vpop.permute.xlu0 %879
        %883 = vrot.lane.b32.xlu0 %v829, 112
        %v884 = vpop.permute.xlu0 %883
        %v886 = vsel %vm359, %v749, %v832
        %v887 = vsel %vm361, %v886, %v836
        %v888 = vsel %vm363, %v887, %v840
        %v889 = vsel %vm365, %v888, %v844
        %v890 = vsel %vm367, %v889, %v848
        %v891 = vsel %vm369, %v890, %v852
        %v892 = vsel %vm371, %v891, %v856
        %v893 = vsel %vm359, %v805, %v860
        %v894 = vsel %vm361, %v893, %v864
        %v895 = vsel %vm363, %v894, %v868
        %v896 = vsel %vm365, %v895, %v872
        %v897 = vsel %vm367, %v896, %v876
        %v898 = vsel %vm369, %v897, %v880
        %v899 = vsel %vm371, %v898, %v884
        %v901 = vsel %vm594, %v183, 0
        %v904 = vsel %vm598, %v892, 0
        %v907 = vsel %vm598, %v899, 0
        %909 = vmatpush.msra.mxu0 0.0
        %910 = vmatpush.msra.mxu0 0.0
        %911 = vmatpush.msra.mxu0 0.0
        %912 = vmatpush.msra.mxu0 0.0
        %913 = vmatpush.msra.mxu0 0.0
        %914 = vmatpush.msra.mxu0 0.0
        %915 = vmatpush.msra.mxu0 0.0
        %916 = vmatpush.msra.mxu0 0.0
        %917 = vmatpush.msra.mxu0 0.0
        %918 = vmatpush.msra.mxu0 0.0
        %919 = vmatpush.msra.mxu0 0.0
        %920 = vmatpush.msra.mxu0 0.0
        %921 = vmatpush.msra.mxu0 0.0
        %922 = vmatpush.msra.mxu0 0.0
        %923 = vmatpush.msra.mxu0 0.0
        %924 = vmatpush.msra.mxu0 %v904
        %925 = vmatmul.f32.gmra.mxu0 %v901
        %v926 = vpop.f32.mrf.mxu0
        %v927 = vadd.f32 0.0, %v926
        %928 = vdwg.mxu0
        %929 = vmatpush.msra.mxu0 0.0
        %930 = vmatpush.msra.mxu0 0.0
        %931 = vmatpush.msra.mxu0 0.0
        %932 = vmatpush.msra.mxu0 0.0
        %933 = vmatpush.msra.mxu0 0.0
        %934 = vmatpush.msra.mxu0 0.0
        %935 = vmatpush.msra.mxu0 0.0
        %936 = vmatpush.msra.mxu0 0.0
        %937 = vmatpush.msra.mxu0 0.0
        %938 = vmatpush.msra.mxu0 0.0
        %939 = vmatpush.msra.mxu0 0.0
        %940 = vmatpush.msra.mxu0 0.0
        %941 = vmatpush.msra.mxu0 0.0
        %942 = vmatpush.msra.mxu0 0.0
        %943 = vmatpush.msra.mxu0 0.0
        %944 = vmatpush.msra.mxu0 %v907
        %945 = vmatmul.f32.gmra.mxu0 %v901
        %v946 = vpop.f32.mrf.mxu0
        %v947 = vadd.f32 0.0, %v946
        %948 = vdwg.mxu0
        %v949 = vadd.f32 %v672, %v927
        %v950 = vadd.f32 %v692, %v947
        %vm955 = vcmask 1046528
        %v956 = vrot.slane %v169, 1
        %v957 = vrot.slane %v170, 1
        %v958 = vsel %vm955, %v956, %v957
        %v959 = vrot.slane %v171, 1
        %v960 = vsel %vm955, %v957, %v959
        %v961 = vrot.slane %v172, 1
        %v962 = vrot.slane %v173, 1
        %v963 = vsel %vm955, %v961, %v962
        %v964 = vrot.slane %v174, 1
        %v965 = vsel %vm955, %v962, %v964
        %v966 = vrot.slane %v175, 1
        %v967 = vrot.slane %v176, 1
        %v968 = vsel %vm955, %v966, %v967
        %v969 = vrot.slane %v177, 1
        %v970 = vsel %vm955, %v967, %v969
        %v971 = vrot.slane %v178, 1
        %v972 = vrot.slane %v179, 1
        %v973 = vsel %vm955, %v971, %v972
        %v974 = vrot.slane %v180, 1
        %v975 = vsel %vm955, %v972, %v974
        %v984 = vrot.slane %v968, 4
        %v985 = vsel %vm191, %v984, %v958
        %v986 = vrot.slane %v958, 4
        %v987 = vsel %vm191, %v968, %v986
        %v989 = vunpack.c.l.s4 1983009808
        %v990 = vunpack.c.0.s8 %v989
        %v991 = vperm.slane %v985, %v990
        %v993 = vunpack.c.l.s4 1983009808
        %v994 = vunpack.c.0.s8 %v993
        %v995 = vperm.slane %v987, %v994
        %v996 = vrot.slane %v973, 4
        %v997 = vsel %vm191, %v996, %v963
        %v998 = vrot.slane %v963, 4
        %v999 = vsel %vm191, %v973, %v998
        %v1001 = vunpack.c.l.s4 1983009808
        %v1002 = vunpack.c.0.s8 %v1001
        %v1003 = vperm.slane %v997, %v1002
        %v1005 = vunpack.c.l.s4 1983009808
        %v1006 = vunpack.c.0.s8 %v1005
        %v1007 = vperm.slane %v999, %v1006
        %v1008 = vrot.slane %v1003, 4
        %v1009 = vsel %vm191, %v1008, %v991
        %v1010 = vrot.slane %v991, 4
        %v1011 = vsel %vm191, %v1003, %v1010
        %v1013 = vunpack.c.l.s4 1934713408
        %v1014 = vunpack.c.0.s8 %v1013
        %v1015 = vperm.slane %v1009, %v1014
        %v1017 = vunpack.c.l.s4 1934713408
        %v1018 = vunpack.c.0.s8 %v1017
        %v1019 = vperm.slane %v1011, %v1018
        %v1020 = vrot.slane %v1007, 4
        %v1021 = vsel %vm191, %v1020, %v995
        %v1022 = vrot.slane %v995, 4
        %v1023 = vsel %vm191, %v1007, %v1022
        %v1025 = vunpack.c.l.s4 1934713408
        %v1026 = vunpack.c.0.s8 %v1025
        %v1027 = vperm.slane %v1021, %v1026
        %v1029 = vunpack.c.l.s4 1934713408
        %v1030 = vunpack.c.0.s8 %v1029
        %v1031 = vperm.slane %v1023, %v1030
        %v1032 = vrot.slane %v1015, 4
        %v1033 = vsel %vm191, 0.0, %v1032
        %v1034 = vrot.slane %v1019, 4
        %v1035 = vsel %vm191, 0.0, %v1034
        %v1036 = vrot.slane %v1027, 4
        %v1037 = vsel %vm191, 0.0, %v1036
        %v1038 = vrot.slane %v1031, 4
        %v1039 = vsel %vm191, 0.0, %v1038
        %v1040 = vrot.slane %v970, 4
        %v1041 = vsel %vm191, %v1040, %v960
        %v1042 = vrot.slane %v960, 4
        %v1043 = vsel %vm191, %v970, %v1042
        %v1045 = vunpack.c.l.s4 1983009808
        %v1046 = vunpack.c.0.s8 %v1045
        %v1047 = vperm.slane %v1041, %v1046
        %v1049 = vunpack.c.l.s4 1983009808
        %v1050 = vunpack.c.0.s8 %v1049
        %v1051 = vperm.slane %v1043, %v1050
        %v1052 = vrot.slane %v975, 4
        %v1053 = vsel %vm191, %v1052, %v965
        %v1054 = vrot.slane %v965, 4
        %v1055 = vsel %vm191, %v975, %v1054
        %v1057 = vunpack.c.l.s4 1983009808
        %v1058 = vunpack.c.0.s8 %v1057
        %v1059 = vperm.slane %v1053, %v1058
        %v1061 = vunpack.c.l.s4 1983009808
        %v1062 = vunpack.c.0.s8 %v1061
        %v1063 = vperm.slane %v1055, %v1062
        %v1064 = vrot.slane %v1059, 4
        %v1065 = vsel %vm191, %v1064, %v1047
        %v1066 = vrot.slane %v1047, 4
        %v1067 = vsel %vm191, %v1059, %v1066
        %v1069 = vunpack.c.l.s4 1934713408
        %v1070 = vunpack.c.0.s8 %v1069
        %v1071 = vperm.slane %v1065, %v1070
        %v1073 = vunpack.c.l.s4 1934713408
        %v1074 = vunpack.c.0.s8 %v1073
        %v1075 = vperm.slane %v1067, %v1074
        %v1076 = vrot.slane %v1063, 4
        %v1077 = vsel %vm191, %v1076, %v1051
        %v1078 = vrot.slane %v1051, 4
        %v1079 = vsel %vm191, %v1063, %v1078
        %v1081 = vunpack.c.l.s4 1934713408
        %v1082 = vunpack.c.0.s8 %v1081
        %v1083 = vperm.slane %v1077, %v1082
        %v1085 = vunpack.c.l.s4 1934713408
        %v1086 = vunpack.c.0.s8 %v1085
        %v1087 = vperm.slane %v1079, %v1086
        %v1088 = vrot.slane %v1071, 4
        %v1089 = vsel %vm191, 0.0, %v1088
        %v1090 = vrot.slane %v1075, 4
        %v1091 = vsel %vm191, 0.0, %v1090
        %v1092 = vrot.slane %v1083, 4
        %v1093 = vsel %vm191, 0.0, %v1092
        %v1094 = vrot.slane %v1087, 4
        %v1095 = vsel %vm191, 0.0, %v1094
        %1097 = vrot.lane.b32.xlu0 %v1033, 16
        %v1098 = vpop.permute.xlu0 %1097
        %1101 = vrot.lane.b32.xlu0 %v1019, 32
        %v1102 = vpop.permute.xlu0 %1101
        %1105 = vrot.lane.b32.xlu0 %v1035, 48
        %v1106 = vpop.permute.xlu0 %1105
        %1109 = vrot.lane.b32.xlu0 %v1027, 64
        %v1110 = vpop.permute.xlu0 %1109
        %1113 = vrot.lane.b32.xlu0 %v1037, 80
        %v1114 = vpop.permute.xlu0 %1113
        %1117 = vrot.lane.b32.xlu0 %v1031, 96
        %v1118 = vpop.permute.xlu0 %1117
        %1121 = vrot.lane.b32.xlu0 %v1039, 112
        %v1122 = vpop.permute.xlu0 %1121
        %1125 = vrot.lane.b32.xlu0 %v1089, 16
        %v1126 = vpop.permute.xlu0 %1125
        %1129 = vrot.lane.b32.xlu0 %v1075, 32
        %v1130 = vpop.permute.xlu0 %1129
        %1133 = vrot.lane.b32.xlu0 %v1091, 48
        %v1134 = vpop.permute.xlu0 %1133
        %1137 = vrot.lane.b32.xlu0 %v1083, 64
        %v1138 = vpop.permute.xlu0 %1137
        %1141 = vrot.lane.b32.xlu0 %v1093, 80
        %v1142 = vpop.permute.xlu0 %1141
        %1145 = vrot.lane.b32.xlu0 %v1087, 96
        %v1146 = vpop.permute.xlu0 %1145
        %1149 = vrot.lane.b32.xlu0 %v1095, 112
        %v1150 = vpop.permute.xlu0 %1149
        %v1152 = vsel %vm359, %v1015, %v1098
        %v1153 = vsel %vm361, %v1152, %v1102
        %v1154 = vsel %vm363, %v1153, %v1106
        %v1155 = vsel %vm365, %v1154, %v1110
        %v1156 = vsel %vm367, %v1155, %v1114
        %v1157 = vsel %vm369, %v1156, %v1118
        %v1158 = vsel %vm371, %v1157, %v1122
        %v1159 = vsel %vm359, %v1071, %v1126
        %v1160 = vsel %vm361, %v1159, %v1130
        %v1161 = vsel %vm363, %v1160, %v1134
        %v1162 = vsel %vm365, %v1161, %v1138
        %v1163 = vsel %vm367, %v1162, %v1142
        %v1164 = vsel %vm369, %v1163, %v1146
        %v1165 = vsel %vm371, %v1164, %v1150
        %v1167 = vsel %vm594, %v184, 0
        %v1170 = vsel %vm598, %v1158, 0
        %v1173 = vsel %vm598, %v1165, 0
        %1175 = vmatpush.msra.mxu0 0.0
        %1176 = vmatpush.msra.mxu0 0.0
        %1177 = vmatpush.msra.mxu0 0.0
        %1178 = vmatpush.msra.mxu0 0.0
        %1179 = vmatpush.msra.mxu0 0.0
        %1180 = vmatpush.msra.mxu0 0.0
        %1181 = vmatpush.msra.mxu0 0.0
        %1182 = vmatpush.msra.mxu0 0.0
        %1183 = vmatpush.msra.mxu0 0.0
        %1184 = vmatpush.msra.mxu0 0.0
        %1185 = vmatpush.msra.mxu0 0.0
        %1186 = vmatpush.msra.mxu0 0.0
        %1187 = vmatpush.msra.mxu0 0.0
        %1188 = vmatpush.msra.mxu0 0.0
        %1189 = vmatpush.msra.mxu0 0.0
        %1190 = vmatpush.msra.mxu0 %v1170
        %1191 = vmatmul.f32.gmra.mxu0 %v1167
        %v1192 = vpop.f32.mrf.mxu0
        %v1193 = vadd.f32 0.0, %v1192
        %1194 = vdwg.mxu0
        %1195 = vmatpush.msra.mxu0 0.0
        %1196 = vmatpush.msra.mxu0 0.0
        %1197 = vmatpush.msra.mxu0 0.0
        %1198 = vmatpush.msra.mxu0 0.0
        %1199 = vmatpush.msra.mxu0 0.0
        %1200 = vmatpush.msra.mxu0 0.0
        %1201 = vmatpush.msra.mxu0 0.0
        %1202 = vmatpush.msra.mxu0 0.0
        %1203 = vmatpush.msra.mxu0 0.0
        %1204 = vmatpush.msra.mxu0 0.0
        %1205 = vmatpush.msra.mxu0 0.0
        %1206 = vmatpush.msra.mxu0 0.0
        %1207 = vmatpush.msra.mxu0 0.0
        %1208 = vmatpush.msra.mxu0 0.0
        %1209 = vmatpush.msra.mxu0 0.0
        %1210 = vmatpush.msra.mxu0 %v1173
        %1211 = vmatmul.f32.gmra.mxu0 %v1167
        %v1212 = vpop.f32.mrf.mxu0
        %v1213 = vadd.f32 0.0, %v1212
        %1214 = vdwg.mxu0
        %v1215 = vadd.f32 %v949, %v1193
        %v1216 = vadd.f32 %v950, %v1213
        %1217 = vrot.lane.b32.xlu0 %v958, 127
        %v1218 = vpop.permute.xlu0 %1217
        %1219 = vrot.lane.b32.xlu0 %v960, 127
        %v1220 = vpop.permute.xlu0 %1219
        %1221 = vrot.lane.b32.xlu0 %v963, 127
        %v1222 = vpop.permute.xlu0 %1221
        %1223 = vrot.lane.b32.xlu0 %v965, 127
        %v1224 = vpop.permute.xlu0 %1223
        %1225 = vrot.lane.b32.xlu0 %v968, 127
        %v1226 = vpop.permute.xlu0 %1225
        %1227 = vrot.lane.b32.xlu0 %v970, 127
        %v1228 = vpop.permute.xlu0 %1227
        %1229 = vrot.lane.b32.xlu0 %v973, 127
        %v1230 = vpop.permute.xlu0 %1229
        %1231 = vrot.lane.b32.xlu0 %v975, 127
        %v1232 = vpop.permute.xlu0 %1231
        %v1241 = vrot.slane %v1226, 4
        %v1242 = vsel %vm191, %v1241, %v1218
        %v1243 = vrot.slane %v1218, 4
        %v1244 = vsel %vm191, %v1226, %v1243
        %v1246 = vunpack.c.l.s4 1983009808
        %v1247 = vunpack.c.0.s8 %v1246
        %v1248 = vperm.slane %v1242, %v1247
        %v1250 = vunpack.c.l.s4 1983009808
        %v1251 = vunpack.c.0.s8 %v1250
        %v1252 = vperm.slane %v1244, %v1251
        %v1253 = vrot.slane %v1230, 4
        %v1254 = vsel %vm191, %v1253, %v1222
        %v1255 = vrot.slane %v1222, 4
        %v1256 = vsel %vm191, %v1230, %v1255
        %v1258 = vunpack.c.l.s4 1983009808
        %v1259 = vunpack.c.0.s8 %v1258
        %v1260 = vperm.slane %v1254, %v1259
        %v1262 = vunpack.c.l.s4 1983009808
        %v1263 = vunpack.c.0.s8 %v1262
        %v1264 = vperm.slane %v1256, %v1263
        %v1265 = vrot.slane %v1260, 4
        %v1266 = vsel %vm191, %v1265, %v1248
        %v1267 = vrot.slane %v1248, 4
        %v1268 = vsel %vm191, %v1260, %v1267
        %v1270 = vunpack.c.l.s4 1934713408
        %v1271 = vunpack.c.0.s8 %v1270
        %v1272 = vperm.slane %v1266, %v1271
        %v1274 = vunpack.c.l.s4 1934713408
        %v1275 = vunpack.c.0.s8 %v1274
        %v1276 = vperm.slane %v1268, %v1275
        %v1277 = vrot.slane %v1264, 4
        %v1278 = vsel %vm191, %v1277, %v1252
        %v1279 = vrot.slane %v1252, 4
        %v1280 = vsel %vm191, %v1264, %v1279
        %v1282 = vunpack.c.l.s4 1934713408
        %v1283 = vunpack.c.0.s8 %v1282
        %v1284 = vperm.slane %v1278, %v1283
        %v1286 = vunpack.c.l.s4 1934713408
        %v1287 = vunpack.c.0.s8 %v1286
        %v1288 = vperm.slane %v1280, %v1287
        %v1289 = vrot.slane %v1272, 4
        %v1290 = vsel %vm191, 0.0, %v1289
        %v1291 = vrot.slane %v1276, 4
        %v1292 = vsel %vm191, 0.0, %v1291
        %v1293 = vrot.slane %v1284, 4
        %v1294 = vsel %vm191, 0.0, %v1293
        %v1295 = vrot.slane %v1288, 4
        %v1296 = vsel %vm191, 0.0, %v1295
        %v1297 = vrot.slane %v1228, 4
        %v1298 = vsel %vm191, %v1297, %v1220
        %v1299 = vrot.slane %v1220, 4
        %v1300 = vsel %vm191, %v1228, %v1299
        %v1302 = vunpack.c.l.s4 1983009808
        %v1303 = vunpack.c.0.s8 %v1302
        %v1304 = vperm.slane %v1298, %v1303
        %v1306 = vunpack.c.l.s4 1983009808
        %v1307 = vunpack.c.0.s8 %v1306
        %v1308 = vperm.slane %v1300, %v1307
        %v1309 = vrot.slane %v1232, 4
        %v1310 = vsel %vm191, %v1309, %v1224
        %v1311 = vrot.slane %v1224, 4
        %v1312 = vsel %vm191, %v1232, %v1311
        %v1314 = vunpack.c.l.s4 1983009808
        %v1315 = vunpack.c.0.s8 %v1314
        %v1316 = vperm.slane %v1310, %v1315
        %v1318 = vunpack.c.l.s4 1983009808
        %v1319 = vunpack.c.0.s8 %v1318
        %v1320 = vperm.slane %v1312, %v1319
        %v1321 = vrot.slane %v1316, 4
        %v1322 = vsel %vm191, %v1321, %v1304
        %v1323 = vrot.slane %v1304, 4
        %v1324 = vsel %vm191, %v1316, %v1323
        %v1326 = vunpack.c.l.s4 1934713408
        %v1327 = vunpack.c.0.s8 %v1326
        %v1328 = vperm.slane %v1322, %v1327
        %v1330 = vunpack.c.l.s4 1934713408
        %v1331 = vunpack.c.0.s8 %v1330
        %v1332 = vperm.slane %v1324, %v1331
        %v1333 = vrot.slane %v1320, 4
        %v1334 = vsel %vm191, %v1333, %v1308
        %v1335 = vrot.slane %v1308, 4
        %v1336 = vsel %vm191, %v1320, %v1335
        %v1338 = vunpack.c.l.s4 1934713408
        %v1339 = vunpack.c.0.s8 %v1338
        %v1340 = vperm.slane %v1334, %v1339
        %v1342 = vunpack.c.l.s4 1934713408
        %v1343 = vunpack.c.0.s8 %v1342
        %v1344 = vperm.slane %v1336, %v1343
        %v1345 = vrot.slane %v1328, 4
        %v1346 = vsel %vm191, 0.0, %v1345
        %v1347 = vrot.slane %v1332, 4
        %v1348 = vsel %vm191, 0.0, %v1347
        %v1349 = vrot.slane %v1340, 4
        %v1350 = vsel %vm191, 0.0, %v1349
        %v1351 = vrot.slane %v1344, 4
        %v1352 = vsel %vm191, 0.0, %v1351
        %1354 = vrot.lane.b32.xlu0 %v1290, 16
        %v1355 = vpop.permute.xlu0 %1354
        %1358 = vrot.lane.b32.xlu0 %v1276, 32
        %v1359 = vpop.permute.xlu0 %1358
        %1362 = vrot.lane.b32.xlu0 %v1292, 48
        %v1363 = vpop.permute.xlu0 %1362
        %1366 = vrot.lane.b32.xlu0 %v1284, 64
        %v1367 = vpop.permute.xlu0 %1366
        %1370 = vrot.lane.b32.xlu0 %v1294, 80
        %v1371 = vpop.permute.xlu0 %1370
        %1374 = vrot.lane.b32.xlu0 %v1288, 96
        %v1375 = vpop.permute.xlu0 %1374
        %1378 = vrot.lane.b32.xlu0 %v1296, 112
        %v1379 = vpop.permute.xlu0 %1378
        %1382 = vrot.lane.b32.xlu0 %v1346, 16
        %v1383 = vpop.permute.xlu0 %1382
        %1386 = vrot.lane.b32.xlu0 %v1332, 32
        %v1387 = vpop.permute.xlu0 %1386
        %1390 = vrot.lane.b32.xlu0 %v1348, 48
        %v1391 = vpop.permute.xlu0 %1390
        %1394 = vrot.lane.b32.xlu0 %v1340, 64
        %v1395 = vpop.permute.xlu0 %1394
        %1398 = vrot.lane.b32.xlu0 %v1350, 80
        %v1399 = vpop.permute.xlu0 %1398
        %1402 = vrot.lane.b32.xlu0 %v1344, 96
        %v1403 = vpop.permute.xlu0 %1402
        %1406 = vrot.lane.b32.xlu0 %v1352, 112
        %v1407 = vpop.permute.xlu0 %1406
        %v1409 = vsel %vm359, %v1272, %v1355
        %v1410 = vsel %vm361, %v1409, %v1359
        %v1411 = vsel %vm363, %v1410, %v1363
        %v1412 = vsel %vm365, %v1411, %v1367
        %v1413 = vsel %vm367, %v1412, %v1371
        %v1414 = vsel %vm369, %v1413, %v1375
        %v1415 = vsel %vm371, %v1414, %v1379
        %v1416 = vsel %vm359, %v1328, %v1383
        %v1417 = vsel %vm361, %v1416, %v1387
        %v1418 = vsel %vm363, %v1417, %v1391
        %v1419 = vsel %vm365, %v1418, %v1395
        %v1420 = vsel %vm367, %v1419, %v1399
        %v1421 = vsel %vm369, %v1420, %v1403
        %v1422 = vsel %vm371, %v1421, %v1407
        %v1424 = vsel %vm594, %v185, 0
        %v1427 = vsel %vm598, %v1415, 0
        %v1430 = vsel %vm598, %v1422, 0
        %1432 = vmatpush.msra.mxu0 0.0
        %1433 = vmatpush.msra.mxu0 0.0
        %1434 = vmatpush.msra.mxu0 0.0
        %1435 = vmatpush.msra.mxu0 0.0
        %1436 = vmatpush.msra.mxu0 0.0
        %1437 = vmatpush.msra.mxu0 0.0
        %1438 = vmatpush.msra.mxu0 0.0
        %1439 = vmatpush.msra.mxu0 0.0
        %1440 = vmatpush.msra.mxu0 0.0
        %1441 = vmatpush.msra.mxu0 0.0
        %1442 = vmatpush.msra.mxu0 0.0
        %1443 = vmatpush.msra.mxu0 0.0
        %1444 = vmatpush.msra.mxu0 0.0
        %1445 = vmatpush.msra.mxu0 0.0
        %1446 = vmatpush.msra.mxu0 0.0
        %1447 = vmatpush.msra.mxu0 %v1427
        %1448 = vmatmul.f32.gmra.mxu0 %v1424
        %v1449 = vpop.f32.mrf.mxu0
        %v1450 = vadd.f32 0.0, %v1449
        %1451 = vdwg.mxu0
        %1452 = vmatpush.msra.mxu0 0.0
        %1453 = vmatpush.msra.mxu0 0.0
        %1454 = vmatpush.msra.mxu0 0.0
        %1455 = vmatpush.msra.mxu0 0.0
        %1456 = vmatpush.msra.mxu0 0.0
        %1457 = vmatpush.msra.mxu0 0.0
        %1458 = vmatpush.msra.mxu0 0.0
        %1459 = vmatpush.msra.mxu0 0.0
        %1460 = vmatpush.msra.mxu0 0.0
        %1461 = vmatpush.msra.mxu0 0.0
        %1462 = vmatpush.msra.mxu0 0.0
        %1463 = vmatpush.msra.mxu0 0.0
        %1464 = vmatpush.msra.mxu0 0.0
        %1465 = vmatpush.msra.mxu0 0.0
        %1466 = vmatpush.msra.mxu0 0.0
        %1467 = vmatpush.msra.mxu0 %v1430
        %1468 = vmatmul.f32.gmra.mxu0 %v1424
        %v1469 = vpop.f32.mrf.mxu0
        %v1470 = vadd.f32 0.0, %v1469
        %1471 = vdwg.mxu0
        %v1472 = vadd.f32 %v1215, %v1450
        %v1473 = vadd.f32 %v1216, %v1470
        %1474 = vrot.lane.b32.xlu0 %v958, 126
        %v1475 = vpop.permute.xlu0 %1474
        %1476 = vrot.lane.b32.xlu0 %v960, 126
        %v1477 = vpop.permute.xlu0 %1476
        %1478 = vrot.lane.b32.xlu0 %v963, 126
        %v1479 = vpop.permute.xlu0 %1478
        %1480 = vrot.lane.b32.xlu0 %v965, 126
        %v1481 = vpop.permute.xlu0 %1480
        %1482 = vrot.lane.b32.xlu0 %v968, 126
        %v1483 = vpop.permute.xlu0 %1482
        %1484 = vrot.lane.b32.xlu0 %v970, 126
        %v1485 = vpop.permute.xlu0 %1484
        %1486 = vrot.lane.b32.xlu0 %v973, 126
        %v1487 = vpop.permute.xlu0 %1486
        %1488 = vrot.lane.b32.xlu0 %v975, 126
        %v1489 = vpop.permute.xlu0 %1488
        %v1498 = vrot.slane %v1483, 4
        %v1499 = vsel %vm191, %v1498, %v1475
        %v1500 = vrot.slane %v1475, 4
        %v1501 = vsel %vm191, %v1483, %v1500
        %v1503 = vunpack.c.l.s4 1983009808
        %v1504 = vunpack.c.0.s8 %v1503
        %v1505 = vperm.slane %v1499, %v1504
        %v1507 = vunpack.c.l.s4 1983009808
        %v1508 = vunpack.c.0.s8 %v1507
        %v1509 = vperm.slane %v1501, %v1508
        %v1510 = vrot.slane %v1487, 4
        %v1511 = vsel %vm191, %v1510, %v1479
        %v1512 = vrot.slane %v1479, 4
        %v1513 = vsel %vm191, %v1487, %v1512
        %v1515 = vunpack.c.l.s4 1983009808
        %v1516 = vunpack.c.0.s8 %v1515
        %v1517 = vperm.slane %v1511, %v1516
        %v1519 = vunpack.c.l.s4 1983009808
        %v1520 = vunpack.c.0.s8 %v1519
        %v1521 = vperm.slane %v1513, %v1520
        %v1522 = vrot.slane %v1517, 4
        %v1523 = vsel %vm191, %v1522, %v1505
        %v1524 = vrot.slane %v1505, 4
        %v1525 = vsel %vm191, %v1517, %v1524
        %v1527 = vunpack.c.l.s4 1934713408
        %v1528 = vunpack.c.0.s8 %v1527
        %v1529 = vperm.slane %v1523, %v1528
        %v1531 = vunpack.c.l.s4 1934713408
        %v1532 = vunpack.c.0.s8 %v1531
        %v1533 = vperm.slane %v1525, %v1532
        %v1534 = vrot.slane %v1521, 4
        %v1535 = vsel %vm191, %v1534, %v1509
        %v1536 = vrot.slane %v1509, 4
        %v1537 = vsel %vm191, %v1521, %v1536
        %v1539 = vunpack.c.l.s4 1934713408
        %v1540 = vunpack.c.0.s8 %v1539
        %v1541 = vperm.slane %v1535, %v1540
        %v1543 = vunpack.c.l.s4 1934713408
        %v1544 = vunpack.c.0.s8 %v1543
        %v1545 = vperm.slane %v1537, %v1544
        %v1546 = vrot.slane %v1529, 4
        %v1547 = vsel %vm191, 0.0, %v1546
        %v1548 = vrot.slane %v1533, 4
        %v1549 = vsel %vm191, 0.0, %v1548
        %v1550 = vrot.slane %v1541, 4
        %v1551 = vsel %vm191, 0.0, %v1550
        %v1552 = vrot.slane %v1545, 4
        %v1553 = vsel %vm191, 0.0, %v1552
        %v1554 = vrot.slane %v1485, 4
        %v1555 = vsel %vm191, %v1554, %v1477
        %v1556 = vrot.slane %v1477, 4
        %v1557 = vsel %vm191, %v1485, %v1556
        %v1559 = vunpack.c.l.s4 1983009808
        %v1560 = vunpack.c.0.s8 %v1559
        %v1561 = vperm.slane %v1555, %v1560
        %v1563 = vunpack.c.l.s4 1983009808
        %v1564 = vunpack.c.0.s8 %v1563
        %v1565 = vperm.slane %v1557, %v1564
        %v1566 = vrot.slane %v1489, 4
        %v1567 = vsel %vm191, %v1566, %v1481
        %v1568 = vrot.slane %v1481, 4
        %v1569 = vsel %vm191, %v1489, %v1568
        %v1571 = vunpack.c.l.s4 1983009808
        %v1572 = vunpack.c.0.s8 %v1571
        %v1573 = vperm.slane %v1567, %v1572
        %v1575 = vunpack.c.l.s4 1983009808
        %v1576 = vunpack.c.0.s8 %v1575
        %v1577 = vperm.slane %v1569, %v1576
        %v1578 = vrot.slane %v1573, 4
        %v1579 = vsel %vm191, %v1578, %v1561
        %v1580 = vrot.slane %v1561, 4
        %v1581 = vsel %vm191, %v1573, %v1580
        %v1583 = vunpack.c.l.s4 1934713408
        %v1584 = vunpack.c.0.s8 %v1583
        %v1585 = vperm.slane %v1579, %v1584
        %v1587 = vunpack.c.l.s4 1934713408
        %v1588 = vunpack.c.0.s8 %v1587
        %v1589 = vperm.slane %v1581, %v1588
        %v1590 = vrot.slane %v1577, 4
        %v1591 = vsel %vm191, %v1590, %v1565
        %v1592 = vrot.slane %v1565, 4
        %v1593 = vsel %vm191, %v1577, %v1592
        %v1595 = vunpack.c.l.s4 1934713408
        %v1596 = vunpack.c.0.s8 %v1595
        %v1597 = vperm.slane %v1591, %v1596
        %v1599 = vunpack.c.l.s4 1934713408
        %v1600 = vunpack.c.0.s8 %v1599
        %v1601 = vperm.slane %v1593, %v1600
        %v1602 = vrot.slane %v1585, 4
        %v1603 = vsel %vm191, 0.0, %v1602
        %v1604 = vrot.slane %v1589, 4
        %v1605 = vsel %vm191, 0.0, %v1604
        %v1606 = vrot.slane %v1597, 4
        %v1607 = vsel %vm191, 0.0, %v1606
        %v1608 = vrot.slane %v1601, 4
        %v1609 = vsel %vm191, 0.0, %v1608
        %1611 = vrot.lane.b32.xlu0 %v1547, 16
        %v1612 = vpop.permute.xlu0 %1611
        %1615 = vrot.lane.b32.xlu0 %v1533, 32
        %v1616 = vpop.permute.xlu0 %1615
        %1619 = vrot.lane.b32.xlu0 %v1549, 48
        %v1620 = vpop.permute.xlu0 %1619
        %1623 = vrot.lane.b32.xlu0 %v1541, 64
        %v1624 = vpop.permute.xlu0 %1623
        %1627 = vrot.lane.b32.xlu0 %v1551, 80
        %v1628 = vpop.permute.xlu0 %1627
        %1631 = vrot.lane.b32.xlu0 %v1545, 96
        %v1632 = vpop.permute.xlu0 %1631
        %1635 = vrot.lane.b32.xlu0 %v1553, 112
        %v1636 = vpop.permute.xlu0 %1635
        %1639 = vrot.lane.b32.xlu0 %v1603, 16
        %v1640 = vpop.permute.xlu0 %1639
        %1643 = vrot.lane.b32.xlu0 %v1589, 32
        %v1644 = vpop.permute.xlu0 %1643
        %1647 = vrot.lane.b32.xlu0 %v1605, 48
        %v1648 = vpop.permute.xlu0 %1647
        %1651 = vrot.lane.b32.xlu0 %v1597, 64
        %v1652 = vpop.permute.xlu0 %1651
        %1655 = vrot.lane.b32.xlu0 %v1607, 80
        %v1656 = vpop.permute.xlu0 %1655
        %1659 = vrot.lane.b32.xlu0 %v1601, 96
        %v1660 = vpop.permute.xlu0 %1659
        %1663 = vrot.lane.b32.xlu0 %v1609, 112
        %v1664 = vpop.permute.xlu0 %1663
        %v1666 = vsel %vm359, %v1529, %v1612
        %v1667 = vsel %vm361, %v1666, %v1616
        %v1668 = vsel %vm363, %v1667, %v1620
        %v1669 = vsel %vm365, %v1668, %v1624
        %v1670 = vsel %vm367, %v1669, %v1628
        %v1671 = vsel %vm369, %v1670, %v1632
        %v1672 = vsel %vm371, %v1671, %v1636
        %v1673 = vsel %vm359, %v1585, %v1640
        %v1674 = vsel %vm361, %v1673, %v1644
        %v1675 = vsel %vm363, %v1674, %v1648
        %v1676 = vsel %vm365, %v1675, %v1652
        %v1677 = vsel %vm367, %v1676, %v1656
        %v1678 = vsel %vm369, %v1677, %v1660
        %v1679 = vsel %vm371, %v1678, %v1664
        %v1681 = vsel %vm594, %v186, 0
        %v1684 = vsel %vm598, %v1672, 0
        %v1687 = vsel %vm598, %v1679, 0
        %1689 = vmatpush.msra.mxu0 0.0
        %1690 = vmatpush.msra.mxu0 0.0
        %1691 = vmatpush.msra.mxu0 0.0
        %1692 = vmatpush.msra.mxu0 0.0
        %1693 = vmatpush.msra.mxu0 0.0
        %1694 = vmatpush.msra.mxu0 0.0
        %1695 = vmatpush.msra.mxu0 0.0
        %1696 = vmatpush.msra.mxu0 0.0
        %1697 = vmatpush.msra.mxu0 0.0
        %1698 = vmatpush.msra.mxu0 0.0
        %1699 = vmatpush.msra.mxu0 0.0
        %1700 = vmatpush.msra.mxu0 0.0
        %1701 = vmatpush.msra.mxu0 0.0
        %1702 = vmatpush.msra.mxu0 0.0
        %1703 = vmatpush.msra.mxu0 0.0
        %1704 = vmatpush.msra.mxu0 %v1684
        %1705 = vmatmul.f32.gmra.mxu0 %v1681
        %v1706 = vpop.f32.mrf.mxu0
        %v1707 = vadd.f32 0.0, %v1706
        %1708 = vdwg.mxu0
        %1709 = vmatpush.msra.mxu0 0.0
        %1710 = vmatpush.msra.mxu0 0.0
        %1711 = vmatpush.msra.mxu0 0.0
        %1712 = vmatpush.msra.mxu0 0.0
        %1713 = vmatpush.msra.mxu0 0.0
        %1714 = vmatpush.msra.mxu0 0.0
        %1715 = vmatpush.msra.mxu0 0.0
        %1716 = vmatpush.msra.mxu0 0.0
        %1717 = vmatpush.msra.mxu0 0.0
        %1718 = vmatpush.msra.mxu0 0.0
        %1719 = vmatpush.msra.mxu0 0.0
        %1720 = vmatpush.msra.mxu0 0.0
        %1721 = vmatpush.msra.mxu0 0.0
        %1722 = vmatpush.msra.mxu0 0.0
        %1723 = vmatpush.msra.mxu0 0.0
        %1724 = vmatpush.msra.mxu0 %v1687
        %1725 = vmatmul.f32.gmra.mxu0 %v1681
        %v1726 = vpop.f32.mrf.mxu0
        %v1727 = vadd.f32 0.0, %v1726
        %1728 = vdwg.mxu0
        %v1729 = vadd.f32 %v1472, %v1707
        %v1730 = vadd.f32 %v1473, %v1727
        %vm1731 = vcmask 1045504
        %v1732 = vrot.slane %v169, 2
        %v1733 = vrot.slane %v170, 2
        %v1734 = vsel %vm1731, %v1732, %v1733
        %v1735 = vrot.slane %v171, 2
        %v1736 = vsel %vm1731, %v1733, %v1735
        %v1737 = vrot.slane %v172, 2
        %v1738 = vrot.slane %v173, 2
        %v1739 = vsel %vm1731, %v1737, %v1738
        %v1740 = vrot.slane %v174, 2
        %v1741 = vsel %vm1731, %v1738, %v1740
        %v1742 = vrot.slane %v175, 2
        %v1743 = vrot.slane %v176, 2
        %v1744 = vsel %vm1731, %v1742, %v1743
        %v1745 = vrot.slane %v177, 2
        %v1746 = vsel %vm1731, %v1743, %v1745
        %v1747 = vrot.slane %v178, 2
        %v1748 = vrot.slane %v179, 2
        %v1749 = vsel %vm1731, %v1747, %v1748
        %v1750 = vrot.slane %v180, 2
        %v1751 = vsel %vm1731, %v1748, %v1750
        %v1760 = vrot.slane %v1744, 4
        %v1761 = vsel %vm191, %v1760, %v1734
        %v1762 = vrot.slane %v1734, 4
        %v1763 = vsel %vm191, %v1744, %v1762
        %v1765 = vunpack.c.l.s4 1983009808
        %v1766 = vunpack.c.0.s8 %v1765
        %v1767 = vperm.slane %v1761, %v1766
        %v1769 = vunpack.c.l.s4 1983009808
        %v1770 = vunpack.c.0.s8 %v1769
        %v1771 = vperm.slane %v1763, %v1770
        %v1772 = vrot.slane %v1749, 4
        %v1773 = vsel %vm191, %v1772, %v1739
        %v1774 = vrot.slane %v1739, 4
        %v1775 = vsel %vm191, %v1749, %v1774
        %v1777 = vunpack.c.l.s4 1983009808
        %v1778 = vunpack.c.0.s8 %v1777
        %v1779 = vperm.slane %v1773, %v1778
        %v1781 = vunpack.c.l.s4 1983009808
        %v1782 = vunpack.c.0.s8 %v1781
        %v1783 = vperm.slane %v1775, %v1782
        %v1784 = vrot.slane %v1779, 4
        %v1785 = vsel %vm191, %v1784, %v1767
        %v1786 = vrot.slane %v1767, 4
        %v1787 = vsel %vm191, %v1779, %v1786
        %v1789 = vunpack.c.l.s4 1934713408
        %v1790 = vunpack.c.0.s8 %v1789
        %v1791 = vperm.slane %v1785, %v1790
        %v1793 = vunpack.c.l.s4 1934713408
        %v1794 = vunpack.c.0.s8 %v1793
        %v1795 = vperm.slane %v1787, %v1794
        %v1796 = vrot.slane %v1783, 4
        %v1797 = vsel %vm191, %v1796, %v1771
        %v1798 = vrot.slane %v1771, 4
        %v1799 = vsel %vm191, %v1783, %v1798
        %v1801 = vunpack.c.l.s4 1934713408
        %v1802 = vunpack.c.0.s8 %v1801
        %v1803 = vperm.slane %v1797, %v1802
        %v1805 = vunpack.c.l.s4 1934713408
        %v1806 = vunpack.c.0.s8 %v1805
        %v1807 = vperm.slane %v1799, %v1806
        %v1808 = vrot.slane %v1791, 4
        %v1809 = vsel %vm191, 0.0, %v1808
        %v1810 = vrot.slane %v1795, 4
        %v1811 = vsel %vm191, 0.0, %v1810
        %v1812 = vrot.slane %v1803, 4
        %v1813 = vsel %vm191, 0.0, %v1812
        %v1814 = vrot.slane %v1807, 4
        %v1815 = vsel %vm191, 0.0, %v1814
        %v1816 = vrot.slane %v1746, 4
        %v1817 = vsel %vm191, %v1816, %v1736
        %v1818 = vrot.slane %v1736, 4
        %v1819 = vsel %vm191, %v1746, %v1818
        %v1821 = vunpack.c.l.s4 1983009808
        %v1822 = vunpack.c.0.s8 %v1821
        %v1823 = vperm.slane %v1817, %v1822
        %v1825 = vunpack.c.l.s4 1983009808
        %v1826 = vunpack.c.0.s8 %v1825
        %v1827 = vperm.slane %v1819, %v1826
        %v1828 = vrot.slane %v1751, 4
        %v1829 = vsel %vm191, %v1828, %v1741
        %v1830 = vrot.slane %v1741, 4
        %v1831 = vsel %vm191, %v1751, %v1830
        %v1833 = vunpack.c.l.s4 1983009808
        %v1834 = vunpack.c.0.s8 %v1833
        %v1835 = vperm.slane %v1829, %v1834
        %v1837 = vunpack.c.l.s4 1983009808
        %v1838 = vunpack.c.0.s8 %v1837
        %v1839 = vperm.slane %v1831, %v1838
        %v1840 = vrot.slane %v1835, 4
        %v1841 = vsel %vm191, %v1840, %v1823
        %v1842 = vrot.slane %v1823, 4
        %v1843 = vsel %vm191, %v1835, %v1842
        %v1845 = vunpack.c.l.s4 1934713408
        %v1846 = vunpack.c.0.s8 %v1845
        %v1847 = vperm.slane %v1841, %v1846
        %v1849 = vunpack.c.l.s4 1934713408
        %v1850 = vunpack.c.0.s8 %v1849
        %v1851 = vperm.slane %v1843, %v1850
        %v1852 = vrot.slane %v1839, 4
        %v1853 = vsel %vm191, %v1852, %v1827
        %v1854 = vrot.slane %v1827, 4
        %v1855 = vsel %vm191, %v1839, %v1854
        %v1857 = vunpack.c.l.s4 1934713408
        %v1858 = vunpack.c.0.s8 %v1857
        %v1859 = vperm.slane %v1853, %v1858
        %v1861 = vunpack.c.l.s4 1934713408
        %v1862 = vunpack.c.0.s8 %v1861
        %v1863 = vperm.slane %v1855, %v1862
        %v1864 = vrot.slane %v1847, 4
        %v1865 = vsel %vm191, 0.0, %v1864
        %v1866 = vrot.slane %v1851, 4
        %v1867 = vsel %vm191, 0.0, %v1866
        %v1868 = vrot.slane %v1859, 4
        %v1869 = vsel %vm191, 0.0, %v1868
        %v1870 = vrot.slane %v1863, 4
        %v1871 = vsel %vm191, 0.0, %v1870
        %1873 = vrot.lane.b32.xlu0 %v1809, 16
        %v1874 = vpop.permute.xlu0 %1873
        %1877 = vrot.lane.b32.xlu0 %v1795, 32
        %v1878 = vpop.permute.xlu0 %1877
        %1881 = vrot.lane.b32.xlu0 %v1811, 48
        %v1882 = vpop.permute.xlu0 %1881
        %1885 = vrot.lane.b32.xlu0 %v1803, 64
        %v1886 = vpop.permute.xlu0 %1885
        %1889 = vrot.lane.b32.xlu0 %v1813, 80
        %v1890 = vpop.permute.xlu0 %1889
        %1893 = vrot.lane.b32.xlu0 %v1807, 96
        %v1894 = vpop.permute.xlu0 %1893
        %1897 = vrot.lane.b32.xlu0 %v1815, 112
        %v1898 = vpop.permute.xlu0 %1897
        %1901 = vrot.lane.b32.xlu0 %v1865, 16
        %v1902 = vpop.permute.xlu0 %1901
        %1905 = vrot.lane.b32.xlu0 %v1851, 32
        %v1906 = vpop.permute.xlu0 %1905
        %1909 = vrot.lane.b32.xlu0 %v1867, 48
        %v1910 = vpop.permute.xlu0 %1909
        %1913 = vrot.lane.b32.xlu0 %v1859, 64
        %v1914 = vpop.permute.xlu0 %1913
        %1917 = vrot.lane.b32.xlu0 %v1869, 80
        %v1918 = vpop.permute.xlu0 %1917
        %1921 = vrot.lane.b32.xlu0 %v1863, 96
        %v1922 = vpop.permute.xlu0 %1921
        %1925 = vrot.lane.b32.xlu0 %v1871, 112
        %v1926 = vpop.permute.xlu0 %1925
        %v1928 = vsel %vm359, %v1791, %v1874
        %v1929 = vsel %vm361, %v1928, %v1878
        %v1930 = vsel %vm363, %v1929, %v1882
        %v1931 = vsel %vm365, %v1930, %v1886
        %v1932 = vsel %vm367, %v1931, %v1890
        %v1933 = vsel %vm369, %v1932, %v1894
        %v1934 = vsel %vm371, %v1933, %v1898
        %v1935 = vsel %vm359, %v1847, %v1902
        %v1936 = vsel %vm361, %v1935, %v1906
        %v1937 = vsel %vm363, %v1936, %v1910
        %v1938 = vsel %vm365, %v1937, %v1914
        %v1939 = vsel %vm367, %v1938, %v1918
        %v1940 = vsel %vm369, %v1939, %v1922
        %v1941 = vsel %vm371, %v1940, %v1926
        %v1943 = vsel %vm594, %v187, 0
        %v1946 = vsel %vm598, %v1934, 0
        %v1949 = vsel %vm598, %v1941, 0
        %1951 = vmatpush.msra.mxu0 0.0
        %1952 = vmatpush.msra.mxu0 0.0
        %1953 = vmatpush.msra.mxu0 0.0
        %1954 = vmatpush.msra.mxu0 0.0
        %1955 = vmatpush.msra.mxu0 0.0
        %1956 = vmatpush.msra.mxu0 0.0
        %1957 = vmatpush.msra.mxu0 0.0
        %1958 = vmatpush.msra.mxu0 0.0
        %1959 = vmatpush.msra.mxu0 0.0
        %1960 = vmatpush.msra.mxu0 0.0
        %1961 = vmatpush.msra.mxu0 0.0
        %1962 = vmatpush.msra.mxu0 0.0
        %1963 = vmatpush.msra.mxu0 0.0
        %1964 = vmatpush.msra.mxu0 0.0
        %1965 = vmatpush.msra.mxu0 0.0
        %1966 = vmatpush.msra.mxu0 %v1946
        %1967 = vmatmul.f32.gmra.mxu0 %v1943
        %v1968 = vpop.f32.mrf.mxu0
        %v1969 = vadd.f32 0.0, %v1968
        %1970 = vdwg.mxu0
        %1971 = vmatpush.msra.mxu0 0.0
        %1972 = vmatpush.msra.mxu0 0.0
        %1973 = vmatpush.msra.mxu0 0.0
        %1974 = vmatpush.msra.mxu0 0.0
        %1975 = vmatpush.msra.mxu0 0.0
        %1976 = vmatpush.msra.mxu0 0.0
        %1977 = vmatpush.msra.mxu0 0.0
        %1978 = vmatpush.msra.mxu0 0.0
        %1979 = vmatpush.msra.mxu0 0.0
        %1980 = vmatpush.msra.mxu0 0.0
        %1981 = vmatpush.msra.mxu0 0.0
        %1982 = vmatpush.msra.mxu0 0.0
        %1983 = vmatpush.msra.mxu0 0.0
        %1984 = vmatpush.msra.mxu0 0.0
        %1985 = vmatpush.msra.mxu0 0.0
        %1986 = vmatpush.msra.mxu0 %v1949
        %1987 = vmatmul.f32.gmra.mxu0 %v1943
        %v1988 = vpop.f32.mrf.mxu0
        %v1989 = vadd.f32 0.0, %v1988
        %1990 = vdwg.mxu0
        %v1991 = vadd.f32 %v1729, %v1969
        %v1992 = vadd.f32 %v1730, %v1989
        %1993 = vrot.lane.b32.xlu0 %v1734, 127
        %v1994 = vpop.permute.xlu0 %1993
        %1995 = vrot.lane.b32.xlu0 %v1736, 127
        %v1996 = vpop.permute.xlu0 %1995
        %1997 = vrot.lane.b32.xlu0 %v1739, 127
        %v1998 = vpop.permute.xlu0 %1997
        %1999 = vrot.lane.b32.xlu0 %v1741, 127
        %v2000 = vpop.permute.xlu0 %1999
        %2001 = vrot.lane.b32.xlu0 %v1744, 127
        %v2002 = vpop.permute.xlu0 %2001
        %2003 = vrot.lane.b32.xlu0 %v1746, 127
        %v2004 = vpop.permute.xlu0 %2003
        %2005 = vrot.lane.b32.xlu0 %v1749, 127
        %v2006 = vpop.permute.xlu0 %2005
        %2007 = vrot.lane.b32.xlu0 %v1751, 127
        %v2008 = vpop.permute.xlu0 %2007
        %v2017 = vrot.slane %v2002, 4
        %v2018 = vsel %vm191, %v2017, %v1994
        %v2019 = vrot.slane %v1994, 4
        %v2020 = vsel %vm191, %v2002, %v2019
        %v2022 = vunpack.c.l.s4 1983009808
        %v2023 = vunpack.c.0.s8 %v2022
        %v2024 = vperm.slane %v2018, %v2023
        %v2026 = vunpack.c.l.s4 1983009808
        %v2027 = vunpack.c.0.s8 %v2026
        %v2028 = vperm.slane %v2020, %v2027
        %v2029 = vrot.slane %v2006, 4
        %v2030 = vsel %vm191, %v2029, %v1998
        %v2031 = vrot.slane %v1998, 4
        %v2032 = vsel %vm191, %v2006, %v2031
        %v2034 = vunpack.c.l.s4 1983009808
        %v2035 = vunpack.c.0.s8 %v2034
        %v2036 = vperm.slane %v2030, %v2035
        %v2038 = vunpack.c.l.s4 1983009808
        %v2039 = vunpack.c.0.s8 %v2038
        %v2040 = vperm.slane %v2032, %v2039
        %v2041 = vrot.slane %v2036, 4
        %v2042 = vsel %vm191, %v2041, %v2024
        %v2043 = vrot.slane %v2024, 4
        %v2044 = vsel %vm191, %v2036, %v2043
        %v2046 = vunpack.c.l.s4 1934713408
        %v2047 = vunpack.c.0.s8 %v2046
        %v2048 = vperm.slane %v2042, %v2047
        %v2050 = vunpack.c.l.s4 1934713408
        %v2051 = vunpack.c.0.s8 %v2050
        %v2052 = vperm.slane %v2044, %v2051
        %v2053 = vrot.slane %v2040, 4
        %v2054 = vsel %vm191, %v2053, %v2028
        %v2055 = vrot.slane %v2028, 4
        %v2056 = vsel %vm191, %v2040, %v2055
        %v2058 = vunpack.c.l.s4 1934713408
        %v2059 = vunpack.c.0.s8 %v2058
        %v2060 = vperm.slane %v2054, %v2059
        %v2062 = vunpack.c.l.s4 1934713408
        %v2063 = vunpack.c.0.s8 %v2062
        %v2064 = vperm.slane %v2056, %v2063
        %v2065 = vrot.slane %v2048, 4
        %v2066 = vsel %vm191, 0.0, %v2065
        %v2067 = vrot.slane %v2052, 4
        %v2068 = vsel %vm191, 0.0, %v2067
        %v2069 = vrot.slane %v2060, 4
        %v2070 = vsel %vm191, 0.0, %v2069
        %v2071 = vrot.slane %v2064, 4
        %v2072 = vsel %vm191, 0.0, %v2071
        %v2073 = vrot.slane %v2004, 4
        %v2074 = vsel %vm191, %v2073, %v1996
        %v2075 = vrot.slane %v1996, 4
        %v2076 = vsel %vm191, %v2004, %v2075
        %v2078 = vunpack.c.l.s4 1983009808
        %v2079 = vunpack.c.0.s8 %v2078
        %v2080 = vperm.slane %v2074, %v2079
        %v2082 = vunpack.c.l.s4 1983009808
        %v2083 = vunpack.c.0.s8 %v2082
        %v2084 = vperm.slane %v2076, %v2083
        %v2085 = vrot.slane %v2008, 4
        %v2086 = vsel %vm191, %v2085, %v2000
        %v2087 = vrot.slane %v2000, 4
        %v2088 = vsel %vm191, %v2008, %v2087
        %v2090 = vunpack.c.l.s4 1983009808
        %v2091 = vunpack.c.0.s8 %v2090
        %v2092 = vperm.slane %v2086, %v2091
        %v2094 = vunpack.c.l.s4 1983009808
        %v2095 = vunpack.c.0.s8 %v2094
        %v2096 = vperm.slane %v2088, %v2095
        %v2097 = vrot.slane %v2092, 4
        %v2098 = vsel %vm191, %v2097, %v2080
        %v2099 = vrot.slane %v2080, 4
        %v2100 = vsel %vm191, %v2092, %v2099
        %v2102 = vunpack.c.l.s4 1934713408
        %v2103 = vunpack.c.0.s8 %v2102
        %v2104 = vperm.slane %v2098, %v2103
        %v2106 = vunpack.c.l.s4 1934713408
        %v2107 = vunpack.c.0.s8 %v2106
        %v2108 = vperm.slane %v2100, %v2107
        %v2109 = vrot.slane %v2096, 4
        %v2110 = vsel %vm191, %v2109, %v2084
        %v2111 = vrot.slane %v2084, 4
        %v2112 = vsel %vm191, %v2096, %v2111
        %v2114 = vunpack.c.l.s4 1934713408
        %v2115 = vunpack.c.0.s8 %v2114
        %v2116 = vperm.slane %v2110, %v2115
        %v2118 = vunpack.c.l.s4 1934713408
        %v2119 = vunpack.c.0.s8 %v2118
        %v2120 = vperm.slane %v2112, %v2119
        %v2121 = vrot.slane %v2104, 4
        %v2122 = vsel %vm191, 0.0, %v2121
        %v2123 = vrot.slane %v2108, 4
        %v2124 = vsel %vm191, 0.0, %v2123
        %v2125 = vrot.slane %v2116, 4
        %v2126 = vsel %vm191, 0.0, %v2125
        %v2127 = vrot.slane %v2120, 4
        %v2128 = vsel %vm191, 0.0, %v2127
        %2130 = vrot.lane.b32.xlu0 %v2066, 16
        %v2131 = vpop.permute.xlu0 %2130
        %2134 = vrot.lane.b32.xlu0 %v2052, 32
        %v2135 = vpop.permute.xlu0 %2134
        %2138 = vrot.lane.b32.xlu0 %v2068, 48
        %v2139 = vpop.permute.xlu0 %2138
        %2142 = vrot.lane.b32.xlu0 %v2060, 64
        %v2143 = vpop.permute.xlu0 %2142
        %2146 = vrot.lane.b32.xlu0 %v2070, 80
        %v2147 = vpop.permute.xlu0 %2146
        %2150 = vrot.lane.b32.xlu0 %v2064, 96
        %v2151 = vpop.permute.xlu0 %2150
        %2154 = vrot.lane.b32.xlu0 %v2072, 112
        %v2155 = vpop.permute.xlu0 %2154
        %2158 = vrot.lane.b32.xlu0 %v2122, 16
        %v2159 = vpop.permute.xlu0 %2158
        %2162 = vrot.lane.b32.xlu0 %v2108, 32
        %v2163 = vpop.permute.xlu0 %2162
        %2166 = vrot.lane.b32.xlu0 %v2124, 48
        %v2167 = vpop.permute.xlu0 %2166
        %2170 = vrot.lane.b32.xlu0 %v2116, 64
        %v2171 = vpop.permute.xlu0 %2170
        %2174 = vrot.lane.b32.xlu0 %v2126, 80
        %v2175 = vpop.permute.xlu0 %2174
        %2178 = vrot.lane.b32.xlu0 %v2120, 96
        %v2179 = vpop.permute.xlu0 %2178
        %2182 = vrot.lane.b32.xlu0 %v2128, 112
        %v2183 = vpop.permute.xlu0 %2182
        %v2185 = vsel %vm359, %v2048, %v2131
        %v2186 = vsel %vm361, %v2185, %v2135
        %v2187 = vsel %vm363, %v2186, %v2139
        %v2188 = vsel %vm365, %v2187, %v2143
        %v2189 = vsel %vm367, %v2188, %v2147
        %v2190 = vsel %vm369, %v2189, %v2151
        %v2191 = vsel %vm371, %v2190, %v2155
        %v2192 = vsel %vm359, %v2104, %v2159
        %v2193 = vsel %vm361, %v2192, %v2163
        %v2194 = vsel %vm363, %v2193, %v2167
        %v2195 = vsel %vm365, %v2194, %v2171
        %v2196 = vsel %vm367, %v2195, %v2175
        %v2197 = vsel %vm369, %v2196, %v2179
        %v2198 = vsel %vm371, %v2197, %v2183
        %v2200 = vsel %vm594, %v188, 0
        %v2203 = vsel %vm598, %v2191, 0
        %v2206 = vsel %vm598, %v2198, 0
        %2208 = vmatpush.msra.mxu0 0.0
        %2209 = vmatpush.msra.mxu0 0.0
        %2210 = vmatpush.msra.mxu0 0.0
        %2211 = vmatpush.msra.mxu0 0.0
        %2212 = vmatpush.msra.mxu0 0.0
        %2213 = vmatpush.msra.mxu0 0.0
        %2214 = vmatpush.msra.mxu0 0.0
        %2215 = vmatpush.msra.mxu0 0.0
        %2216 = vmatpush.msra.mxu0 0.0
        %2217 = vmatpush.msra.mxu0 0.0
        %2218 = vmatpush.msra.mxu0 0.0
        %2219 = vmatpush.msra.mxu0 0.0
        %2220 = vmatpush.msra.mxu0 0.0
        %2221 = vmatpush.msra.mxu0 0.0
        %2222 = vmatpush.msra.mxu0 0.0
        %2223 = vmatpush.msra.mxu0 %v2203
        %2224 = vmatmul.f32.gmra.mxu0 %v2200
        %v2225 = vpop.f32.mrf.mxu0
        %v2226 = vadd.f32 0.0, %v2225
        %2227 = vdwg.mxu0
        %2228 = vmatpush.msra.mxu0 0.0
        %2229 = vmatpush.msra.mxu0 0.0
        %2230 = vmatpush.msra.mxu0 0.0
        %2231 = vmatpush.msra.mxu0 0.0
        %2232 = vmatpush.msra.mxu0 0.0
        %2233 = vmatpush.msra.mxu0 0.0
        %2234 = vmatpush.msra.mxu0 0.0
        %2235 = vmatpush.msra.mxu0 0.0
        %2236 = vmatpush.msra.mxu0 0.0
        %2237 = vmatpush.msra.mxu0 0.0
        %2238 = vmatpush.msra.mxu0 0.0
        %2239 = vmatpush.msra.mxu0 0.0
        %2240 = vmatpush.msra.mxu0 0.0
        %2241 = vmatpush.msra.mxu0 0.0
        %2242 = vmatpush.msra.mxu0 0.0
        %2243 = vmatpush.msra.mxu0 %v2206
        %2244 = vmatmul.f32.gmra.mxu0 %v2200
        %v2245 = vpop.f32.mrf.mxu0
        %v2246 = vadd.f32 0.0, %v2245
        %2247 = vdwg.mxu0
        %v2248 = vadd.f32 %v1991, %v2226
        %v2249 = vadd.f32 %v1992, %v2246
        %2250 = vrot.lane.b32.xlu0 %v1734, 126
        %v2251 = vpop.permute.xlu0 %2250
        %2252 = vrot.lane.b32.xlu0 %v1736, 126
        %v2253 = vpop.permute.xlu0 %2252
        %2254 = vrot.lane.b32.xlu0 %v1739, 126
        %v2255 = vpop.permute.xlu0 %2254
        %2256 = vrot.lane.b32.xlu0 %v1741, 126
        %v2257 = vpop.permute.xlu0 %2256
        %2258 = vrot.lane.b32.xlu0 %v1744, 126
        %v2259 = vpop.permute.xlu0 %2258
        %2260 = vrot.lane.b32.xlu0 %v1746, 126
        %v2261 = vpop.permute.xlu0 %2260
        %2262 = vrot.lane.b32.xlu0 %v1749, 126
        %v2263 = vpop.permute.xlu0 %2262
        %2264 = vrot.lane.b32.xlu0 %v1751, 126
        %v2265 = vpop.permute.xlu0 %2264
        %v2274 = vrot.slane %v2259, 4
        %v2275 = vsel %vm191, %v2274, %v2251
        %v2276 = vrot.slane %v2251, 4
        %v2277 = vsel %vm191, %v2259, %v2276
        %v2279 = vunpack.c.l.s4 1983009808
        %v2280 = vunpack.c.0.s8 %v2279
        %v2281 = vperm.slane %v2275, %v2280
        %v2283 = vunpack.c.l.s4 1983009808
        %v2284 = vunpack.c.0.s8 %v2283
        %v2285 = vperm.slane %v2277, %v2284
        %v2286 = vrot.slane %v2263, 4
        %v2287 = vsel %vm191, %v2286, %v2255
        %v2288 = vrot.slane %v2255, 4
        %v2289 = vsel %vm191, %v2263, %v2288
        %v2291 = vunpack.c.l.s4 1983009808
        %v2292 = vunpack.c.0.s8 %v2291
        %v2293 = vperm.slane %v2287, %v2292
        %v2295 = vunpack.c.l.s4 1983009808
        %v2296 = vunpack.c.0.s8 %v2295
        %v2297 = vperm.slane %v2289, %v2296
        %v2298 = vrot.slane %v2293, 4
        %v2299 = vsel %vm191, %v2298, %v2281
        %v2300 = vrot.slane %v2281, 4
        %v2301 = vsel %vm191, %v2293, %v2300
        %v2303 = vunpack.c.l.s4 1934713408
        %v2304 = vunpack.c.0.s8 %v2303
        %v2305 = vperm.slane %v2299, %v2304
        %v2307 = vunpack.c.l.s4 1934713408
        %v2308 = vunpack.c.0.s8 %v2307
        %v2309 = vperm.slane %v2301, %v2308
        %v2310 = vrot.slane %v2297, 4
        %v2311 = vsel %vm191, %v2310, %v2285
        %v2312 = vrot.slane %v2285, 4
        %v2313 = vsel %vm191, %v2297, %v2312
        %v2315 = vunpack.c.l.s4 1934713408
        %v2316 = vunpack.c.0.s8 %v2315
        %v2317 = vperm.slane %v2311, %v2316
        %v2319 = vunpack.c.l.s4 1934713408
        %v2320 = vunpack.c.0.s8 %v2319
        %v2321 = vperm.slane %v2313, %v2320
        %v2322 = vrot.slane %v2305, 4
        %v2323 = vsel %vm191, 0.0, %v2322
        %v2324 = vrot.slane %v2309, 4
        %v2325 = vsel %vm191, 0.0, %v2324
        %v2326 = vrot.slane %v2317, 4
        %v2327 = vsel %vm191, 0.0, %v2326
        %v2328 = vrot.slane %v2321, 4
        %v2329 = vsel %vm191, 0.0, %v2328
        %v2330 = vrot.slane %v2261, 4
        %v2331 = vsel %vm191, %v2330, %v2253
        %v2332 = vrot.slane %v2253, 4
        %v2333 = vsel %vm191, %v2261, %v2332
        %v2335 = vunpack.c.l.s4 1983009808
        %v2336 = vunpack.c.0.s8 %v2335
        %v2337 = vperm.slane %v2331, %v2336
        %v2339 = vunpack.c.l.s4 1983009808
        %v2340 = vunpack.c.0.s8 %v2339
        %v2341 = vperm.slane %v2333, %v2340
        %v2342 = vrot.slane %v2265, 4
        %v2343 = vsel %vm191, %v2342, %v2257
        %v2344 = vrot.slane %v2257, 4
        %v2345 = vsel %vm191, %v2265, %v2344
        %v2347 = vunpack.c.l.s4 1983009808
        %v2348 = vunpack.c.0.s8 %v2347
        %v2349 = vperm.slane %v2343, %v2348
        %v2351 = vunpack.c.l.s4 1983009808
        %v2352 = vunpack.c.0.s8 %v2351
        %v2353 = vperm.slane %v2345, %v2352
        %v2354 = vrot.slane %v2349, 4
        %v2355 = vsel %vm191, %v2354, %v2337
        %v2356 = vrot.slane %v2337, 4
        %v2357 = vsel %vm191, %v2349, %v2356
        %v2359 = vunpack.c.l.s4 1934713408
        %v2360 = vunpack.c.0.s8 %v2359
        %v2361 = vperm.slane %v2355, %v2360
        %v2363 = vunpack.c.l.s4 1934713408
        %v2364 = vunpack.c.0.s8 %v2363
        %v2365 = vperm.slane %v2357, %v2364
        %v2366 = vrot.slane %v2353, 4
        %v2367 = vsel %vm191, %v2366, %v2341
        %v2368 = vrot.slane %v2341, 4
        %v2369 = vsel %vm191, %v2353, %v2368
        %v2371 = vunpack.c.l.s4 1934713408
        %v2372 = vunpack.c.0.s8 %v2371
        %v2373 = vperm.slane %v2367, %v2372
        %v2375 = vunpack.c.l.s4 1934713408
        %v2376 = vunpack.c.0.s8 %v2375
        %v2377 = vperm.slane %v2369, %v2376
        %v2378 = vrot.slane %v2361, 4
        %v2379 = vsel %vm191, 0.0, %v2378
        %v2380 = vrot.slane %v2365, 4
        %v2381 = vsel %vm191, 0.0, %v2380
        %v2382 = vrot.slane %v2373, 4
        %v2383 = vsel %vm191, 0.0, %v2382
        %v2384 = vrot.slane %v2377, 4
        %v2385 = vsel %vm191, 0.0, %v2384
        %2387 = vrot.lane.b32.xlu0 %v2323, 16
        %v2388 = vpop.permute.xlu0 %2387
        %2391 = vrot.lane.b32.xlu0 %v2309, 32
        %v2392 = vpop.permute.xlu0 %2391
        %2395 = vrot.lane.b32.xlu0 %v2325, 48
        %v2396 = vpop.permute.xlu0 %2395
        %2399 = vrot.lane.b32.xlu0 %v2317, 64
        %v2400 = vpop.permute.xlu0 %2399
        %2403 = vrot.lane.b32.xlu0 %v2327, 80
        %v2404 = vpop.permute.xlu0 %2403
        %2407 = vrot.lane.b32.xlu0 %v2321, 96
        %v2408 = vpop.permute.xlu0 %2407
        %2411 = vrot.lane.b32.xlu0 %v2329, 112
        %v2412 = vpop.permute.xlu0 %2411
        %2415 = vrot.lane.b32.xlu0 %v2379, 16
        %v2416 = vpop.permute.xlu0 %2415
        %2419 = vrot.lane.b32.xlu0 %v2365, 32
        %v2420 = vpop.permute.xlu0 %2419
        %2423 = vrot.lane.b32.xlu0 %v2381, 48
        %v2424 = vpop.permute.xlu0 %2423
        %2427 = vrot.lane.b32.xlu0 %v2373, 64
        %v2428 = vpop.permute.xlu0 %2427
        %2431 = vrot.lane.b32.xlu0 %v2383, 80
        %v2432 = vpop.permute.xlu0 %2431
        %2435 = vrot.lane.b32.xlu0 %v2377, 96
        %v2436 = vpop.permute.xlu0 %2435
        %2439 = vrot.lane.b32.xlu0 %v2385, 112
        %v2440 = vpop.permute.xlu0 %2439
        %v2442 = vsel %vm359, %v2305, %v2388
        %v2443 = vsel %vm361, %v2442, %v2392
        %v2444 = vsel %vm363, %v2443, %v2396
        %v2445 = vsel %vm365, %v2444, %v2400
        %v2446 = vsel %vm367, %v2445, %v2404
        %v2447 = vsel %vm369, %v2446, %v2408
        %v2448 = vsel %vm371, %v2447, %v2412
        %v2449 = vsel %vm359, %v2361, %v2416
        %v2450 = vsel %vm361, %v2449, %v2420
        %v2451 = vsel %vm363, %v2450, %v2424
        %v2452 = vsel %vm365, %v2451, %v2428
        %v2453 = vsel %vm367, %v2452, %v2432
        %v2454 = vsel %vm369, %v2453, %v2436
        %v2455 = vsel %vm371, %v2454, %v2440
        %v2457 = vsel %vm594, %v189, 0
        %v2460 = vsel %vm598, %v2448, 0
        %v2463 = vsel %vm598, %v2455, 0
        %2465 = vmatpush.msra.mxu0 0.0
        %2466 = vmatpush.msra.mxu0 0.0
        %2467 = vmatpush.msra.mxu0 0.0
        %2468 = vmatpush.msra.mxu0 0.0
        %2469 = vmatpush.msra.mxu0 0.0
        %2470 = vmatpush.msra.mxu0 0.0
        %2471 = vmatpush.msra.mxu0 0.0
        %2472 = vmatpush.msra.mxu0 0.0
        %2473 = vmatpush.msra.mxu0 0.0
        %2474 = vmatpush.msra.mxu0 0.0
        %2475 = vmatpush.msra.mxu0 0.0
        %2476 = vmatpush.msra.mxu0 0.0
        %2477 = vmatpush.msra.mxu0 0.0
        %2478 = vmatpush.msra.mxu0 0.0
        %2479 = vmatpush.msra.mxu0 0.0
        %2480 = vmatpush.msra.mxu0 %v2460
        %2481 = vmatmul.f32.gmra.mxu0 %v2457
        %v2482 = vpop.f32.mrf.mxu0
        %v2483 = vadd.f32 0.0, %v2482
        %2484 = vdwg.mxu0
        %2485 = vmatpush.msra.mxu0 0.0
        %2486 = vmatpush.msra.mxu0 0.0
        %2487 = vmatpush.msra.mxu0 0.0
        %2488 = vmatpush.msra.mxu0 0.0
        %2489 = vmatpush.msra.mxu0 0.0
        %2490 = vmatpush.msra.mxu0 0.0
        %2491 = vmatpush.msra.mxu0 0.0
        %2492 = vmatpush.msra.mxu0 0.0
        %2493 = vmatpush.msra.mxu0 0.0
        %2494 = vmatpush.msra.mxu0 0.0
        %2495 = vmatpush.msra.mxu0 0.0
        %2496 = vmatpush.msra.mxu0 0.0
        %2497 = vmatpush.msra.mxu0 0.0
        %2498 = vmatpush.msra.mxu0 0.0
        %2499 = vmatpush.msra.mxu0 0.0
        %2500 = vmatpush.msra.mxu0 %v2463
        %2501 = vmatmul.f32.gmra.mxu0 %v2457
        %v2502 = vpop.f32.mrf.mxu0
        %v2503 = vadd.f32 0.0, %v2502
        %2504 = vdwg.mxu0
        %v2505 = vadd.f32 %v2248, %v2483
        %v2506 = vadd.f32 %v2249, %v2503
        %v2507 = vld [vmem:[%s2] sm:$0xff]
        %2509 = vset.pattern.permute.xlu0 0
        %2510 = vperm.xlu0 %2509, %v2507
        %v2511 = vpop.permute.xlu0 %2510
        %v2513 = vadd.f32 %v2505, %v2511
        %v2514 = vadd.f32 %v2506, %v2511
        %v2515 = vmax.f32 %v2513, 0.0
        %v2516 = vmax.f32 %v2514, 0.0
        %2517 = vst [vmem:[%s163] sm:$0xff] %v2515
        %2518 = vst [vmem:[%s163 + $0x8] sm:$0xff] %v2516
        %s2519 = sand.u32 %s93, 1
        %s2520 = scalar_lea.sflag [#allocation3], %s2519
        %s2521 = sand.u32 %s93, 1
        %s2522 = smul.addr %s2521, 16
        %s2523 = scalar_lea.vmem [#allocation2], %s2522
        // Predicated region
        $region33: #{tpu_custom_call.1} parent=31 // pred_check
          %p2524 = pneg %p103
        $region34: #{tpu_custom_call.1} parent=31 // pred_check_branch
          %2526 = sbr.rel (%p2524) target = $region36
        $region35: #{tpu_custom_call.1} parent=31 // pred_region
          %2528 = vsyncadd %s2520, 0
          %s2529 = smul.addr %s17, 2
          %s2530 = smul.addr %s2529, 8
          %s2531 = scalar_lea.hbm %s3, %s2530
          %s2533 = sshll.u32 %s2523, 4
          %s2534 = int_to_ptr.vmem [resolvable:$true] %s2533
          %s2535 = sshll.u32 %s2531, 4
          %s2536 = int_to_ptr.hbm [resolvable:$true] %s2535
          %2538 = dma.vmem_to_hbm [thread:$0]  %s2534, 256, %s2536, %s2520
        $region36: #{tpu_custom_call.1} parent=31 // pred_fallthru
          _
      $region32: #{tpu_custom_call.1} parent=5 // pred_fallthru
        _
      %p2539 = scmp.le.s32.totalorder 2, %s12
      // Predicated region
      $region37: #{tpu_custom_call.1} parent=5 // pred_check
        %p2540 = pneg %p2539
      $region38: #{tpu_custom_call.1} parent=5 // pred_check_branch
        %2542 = sbr.rel (%p2540) target = $region40
      $region39: #{tpu_custom_call.1} parent=5 // pred_region
        %s2543 = ssub.s32 %s12, 2
        // Predicated region
        $region41: #{tpu_custom_call.1} parent=39 // pred_check
          %p2544 = pneg %p109
        $region42: #{tpu_custom_call.1} parent=39 // pred_check_branch
          %2546 = sbr.rel (%p2544) target = $region44
        $region43: #{tpu_custom_call.1} parent=39 // pred_region
          %s2547 = sand.u32 %s94, 1
          %s2548 = scalar_lea.sflag [#allocation3], %s2547
          %s2549 = sand.u32 %s94, 1
          %s2550 = smul.addr %s2549, 16
          %s2551 = scalar_lea.vmem [#allocation2], %s2550
          %2553 = dma.done %s2548, 256
        $region44: #{tpu_custom_call.1} parent=39 // pred_fallthru
          _
      $region40: #{tpu_custom_call.1} parent=5 // pred_fallthru
        _
    $region6: #{tpu_custom_call.1} parent=1 // loop_footer
      %s16 = sadd.s32 1, %s12
    $region7: #{tpu_custom_call.1} parent=1 // loop_footer_branch
      %11 = sbr.rel target = $region3
    $region8: #{tpu_custom_call.1} parent=1 // loop_exit
      _
    %2554 = vsyncpa [#allocation3], 1
    %s2555 = scalar_lea.sflag [#allocation3], 1
    %2556 = vsyncpa %s2555, 1

</llo_original>
